<compile_context>
chip_gen: v5e
topology: v5e:2x2
jax: 0.10.0
libtpu: 0.0.40
codegen_flags: <defaults>
</compile_context>

<pallas_src>
import jax
import jax.numpy as jnp
from jax import lax
from jax.experimental import pallas as pl
from jax.experimental.pallas import tpu as pltpu


# ----------------------------------------------------------------------------
# Slab-depth selection: biggest depth that divides D, keeps the slab small, and
# leaves at least two slabs so the DMA pipeline / megacore have work to overlap.
# ----------------------------------------------------------------------------
def _pick_slab_depth(D, H, W, budget_bytes=1 << 20):
    plane_bytes = 3 * H * W * 4            # budget in f32 terms (conservative)
    cap = max(1, min(D, budget_bytes // max(plane_bytes, 1)))
    if cap >= D and D >= 4:
        cap = D // 2                        # keep >=2 slabs for pipelining
    for td in range(cap, 0, -1):
        if D % td == 0:
            return td
    return 1


# ----------------------------------------------------------------------------
# Fused kernel: per (batch, depth-slab) -> scalar partial sum of energy density
# ----------------------------------------------------------------------------
def _make_energy_kernel(D, TD, H, W, lam, mu):
    def kernel(f_ref, fprev_ref, fnext_ref, out_ref):
        # f_ref:     (1, 3, TD, H, W)  raw field slab (native dtype)
        # fprev_ref: (1, 3, 1,  H, W)  depth plane max(t*TD-1, 0)
        # fnext_ref: (1, 3, 1,  H, W)  depth plane min((t+1)*TD, D-1)
        # out_ref:   (1, 1, 1, 1)      partial sum for this (b, slab)
        t = pl.program_id(1)
        shape = (TD, H, W)

        # torch.gradient: one-sided (scale 1) differences on the two faces of
        # each axis, central (scale 0.5) differences inside.
        gd = t * TD + lax.broadcasted_iota(jnp.int32, shape, 0)   # global depth
        dsc = jnp.where((gd == 0) | (gd == D - 1), 1.0, 0.5)
        hi = lax.broadcasted_iota(jnp.int32, shape, 1)
        hsc = jnp.where((hi == 0) | (hi == H - 1), 1.0, 0.5)
        wi = lax.broadcasted_iota(jnp.int32, shape, 2)
        wsc = jnp.where((wi == 0) | (wi == W - 1), 1.0, 0.5)

        gD, gH, gW = [], [], []
        for c in range(3):                                  # 3 displacement chans
            x = f_ref[0, c].astype(jnp.float32)             # (TD, H, W)
            # d/dD: one-plane halo per side; the index_map clamps at the global
            # faces, which makes (next - prev) * 1 the correct one-sided diff.
            prv = fprev_ref[0, c].astype(jnp.float32)       # (1, H, W)
            nxt = fnext_ref[0, c].astype(jnp.float32)       # (1, H, W)
            ext = jnp.concatenate([prv, x, nxt], axis=0)    # (TD+2, H, W)
            gD.append((ext[2:TD + 2] - ext[0:TD]) * dsc)
            # d/dH: edge-clamped +-1 shifts along the sublane axis.
            up = jnp.concatenate([x[:, :1, :], x[:, :-1, :]], axis=1)
            dn = jnp.concatenate([x[:, 1:, :], x[:, -1:, :]], axis=1)
            gH.append((dn - up) * hsc)
            # d/dW: edge-clamped +-1 shifts along the lane axis.
            lf = jnp.concatenate([x[:, :, :1], x[:, :, :-1]], axis=2)
            rt = jnp.concatenate([x[:, :, 1:], x[:, :, -1:]], axis=2)
            gW.append((rt - lf) * wsc)

        # Strain tensor (same index convention as the PyTorch module).
        e_xx, e_yy, e_zz = gD[0], gH[1], gW[2]
        e_xy = 0.5 * (gH[0] + gD[1])
        e_xz = 0.5 * (gW[0] + gD[2])
        e_yz = 0.5 * (gW[1] + gH[2])

        tr = e_xx + e_yy + e_zz
        dens = (0.5 * lam) * tr * tr + mu * (
            e_xx * e_xx + e_yy * e_yy + e_zz * e_zz
            + 2.0 * (e_xy * e_xy + e_xz * e_xz + e_yz * e_yz))

        s = jnp.sum(dens, axis=0)                           # (H, W)
        s = jnp.sum(s, axis=0, keepdims=True)               # (1, W)
        s = jnp.sum(s, axis=1, keepdims=True)               # (1, 1)
        out_ref[0, 0] = s
    return kernel


# ----------------------------------------------------------------------------
# Wrapper
# ----------------------------------------------------------------------------
def elastic_energy_loss(deformation_field, lambda_lame, mu_lame):
    """deformation_field: (B, 3, D, H, W) -> scalar mean elastic energy density."""
    B, C, D, H, W = deformation_field.shape
    assert C == 3, "deformation field must have 3 displacement channels"
    assert D >= 2 and H >= 2 and W >= 2

    f = deformation_field                   # read once, in native dtype
    TD = _pick_slab_depth(D, H, W)
    nD = D // TD

    kernel = _make_energy_kernel(D, TD, H, W, float(lambda_lame), float(mu_lame))

    partial = pl.pallas_call(
        kernel,
        out_shape=jax.ShapeDtypeStruct((B, nD, 1, 1), jnp.float32),
        grid=(B, nD),
        in_specs=[
            # TD-deep slab of the raw field.
            pl.BlockSpec((1, 3, TD, H, W), lambda b, t: (b, 0, t, 0, 0)),
            # Previous / next depth planes (edge-clamped block indices).
            pl.BlockSpec((1, 3, 1, H, W),
                         lambda b, t: (b, 0, jnp.maximum(t * TD - 1, 0), 0, 0)),
            pl.BlockSpec((1, 3, 1, H, W),
                         lambda b, t: (b, 0, jnp.minimum((t + 1) * TD, D - 1), 0, 0)),
        ],
        out_specs=pl.BlockSpec((1, 1, 1, 1), lambda b, t: (b, t, 0, 0)),
        compiler_params=pltpu.CompilerParams(
            dimension_semantics=("parallel", "parallel")),
    )(f, f, f)

    return jnp.sum(partial) / (B * D * H * W)


# ----------------------------------------------------------------------------
# Pure-JAX reference (numpy-gradient semantics == torch.gradient, spacing=1)
# ----------------------------------------------------------------------------
def _loss_ref(field, lam, mu):
    u = field.astype(jnp.float32)

    def grads(x):
        out = []
        for ax in (-3, -2, -1):
            g = jnp.gradient(x, axis=ax)
            out.append(g[0] if isinstance(g, (list, tuple)) else g)
        return out

    dfdx, dfdy, dfdz = grads(u[:, 0]), grads(u[:, 1]), grads(u[:, 2])
    e_xx, e_yy, e_zz = dfdx[0], dfdy[1], dfdz[2]
    e_xy = 0.5 * (dfdx[1] + dfdy[0])
    e_xz = 0.5 * (dfdx[2] + dfdz[0])
    e_yz = 0.5 * (dfdy[2] + dfdz[1])
    tr = e_xx + e_yy + e_zz
    dens = 0.5 * lam * tr ** 2 + mu * (
        e_xx ** 2 + e_yy ** 2 + e_zz ** 2
        + 2.0 * (e_xy ** 2 + e_xz ** 2 + e_yz ** 2))
    return jnp.mean(dens)


if __name__ == "__main__":
    key = jax.random.PRNGKey(0)
    B, C, D, H, W = 2, 3, 12, 10, 16          # small, distinct spatial sizes
    field = jax.random.normal(key, (B, C, D, H, W), dtype=jnp.float32)
    lam, mu = 2.0, 1.5

    loss_fn = jax.jit(lambda x: elastic_energy_loss(x, lam, mu))
    loss = loss_fn(field)
    jax.block_until_ready(loss)

    ref = _loss_ref(field, lam, mu)
    assert jnp.isfinite(loss), loss
    assert jnp.allclose(loss, ref, rtol=1e-4, atol=1e-7), (float(loss), float(ref))
    print("KERNEL_OK")
</pallas_src>

<mosaic_0001>
module attributes {stable_mosaic.version = 11 : i64} {
  func.func @kernel(%arg0: i32, %arg1: i32, %arg2: memref<1x3x6x10x16xf32, #tpu.memory_space<vmem>>, %arg3: memref<1x3x1x10x16xf32, #tpu.memory_space<vmem>>, %arg4: memref<1x3x1x10x16xf32, #tpu.memory_space<vmem>>, %arg5: memref<1x1x1x1xf32, #tpu.memory_space<vmem>>) attributes {dimension_semantics = [#tpu.dimension_semantics<parallel>, #tpu.dimension_semantics<parallel>], iteration_bounds = array<i64: 2, 2>, scalar_prefetch = 0 : i64, scratch_operands = 0 : i64, tpu.core_type = #tpu.core_type<tc>, window_params = [{transform_indices = @transform_0, window_bounds = array<i64: 1, 3, 6, 10, 16>}, {transform_indices = @transform_1, window_bounds = array<i64: 1, 3, 1, 10, 16>}, {transform_indices = @transform_2, window_bounds = array<i64: 1, 3, 1, 10, 16>}, {transform_indices = @transform_3, window_bounds = array<i64: 1, 1, 1, 1>}]} {
    %c6_i32 = arith.constant 6 : i32
    %0 = arith.muli %arg1, %c6_i32 : i32
    %1 = tpu.iota {dimensions = array<i32: 0>} : vector<6x10x16xi32>
    %2 = vector.broadcast %0 : i32 to vector<6x10x16xi32>
    %3 = arith.addi %2, %1 : vector<6x10x16xi32>
    %c0_i32 = arith.constant 0 : i32
    %4 = vector.broadcast %c0_i32 : i32 to vector<6x10x16xi32>
    %5 = arith.cmpi eq, %3, %4 : vector<6x10x16xi32>
    %c11_i32 = arith.constant 11 : i32
    %6 = vector.broadcast %c11_i32 : i32 to vector<6x10x16xi32>
    %7 = arith.cmpi eq, %3, %6 : vector<6x10x16xi32>
    %8 = arith.ori %5, %7 : vector<6x10x16xi1>
    %cst = arith.constant 1.000000e+00 : f32
    %cst_0 = arith.constant 5.000000e-01 : f32
    %9 = vector.broadcast %cst : f32 to vector<6x10x16xf32>
    %10 = vector.broadcast %cst_0 : f32 to vector<6x10x16xf32>
    %11 = arith.select %8, %9, %10 : vector<6x10x16xi1>, vector<6x10x16xf32>
    %12 = tpu.iota {dimensions = array<i32: 1>} : vector<6x10x16xi32>
    %c0_i32_1 = arith.constant 0 : i32
    %13 = vector.broadcast %c0_i32_1 : i32 to vector<6x10x16xi32>
    %14 = arith.cmpi eq, %12, %13 : vector<6x10x16xi32>
    %c9_i32 = arith.constant 9 : i32
    %15 = vector.broadcast %c9_i32 : i32 to vector<6x10x16xi32>
    %16 = arith.cmpi eq, %12, %15 : vector<6x10x16xi32>
    %17 = arith.ori %14, %16 : vector<6x10x16xi1>
    %cst_2 = arith.constant 1.000000e+00 : f32
    %cst_3 = arith.constant 5.000000e-01 : f32
    %18 = vector.broadcast %cst_2 : f32 to vector<6x10x16xf32>
    %19 = vector.broadcast %cst_3 : f32 to vector<6x10x16xf32>
    %20 = arith.select %17, %18, %19 : vector<6x10x16xi1>, vector<6x10x16xf32>
    %21 = tpu.iota {dimensions = array<i32: 2>} : vector<6x10x16xi32>
    %c0_i32_4 = arith.constant 0 : i32
    %22 = vector.broadcast %c0_i32_4 : i32 to vector<6x10x16xi32>
    %23 = arith.cmpi eq, %21, %22 : vector<6x10x16xi32>
    %c15_i32 = arith.constant 15 : i32
    %24 = vector.broadcast %c15_i32 : i32 to vector<6x10x16xi32>
    %25 = arith.cmpi eq, %21, %24 : vector<6x10x16xi32>
    %26 = arith.ori %23, %25 : vector<6x10x16xi1>
    %cst_5 = arith.constant 1.000000e+00 : f32
    %cst_6 = arith.constant 5.000000e-01 : f32
    %27 = vector.broadcast %cst_5 : f32 to vector<6x10x16xf32>
    %28 = vector.broadcast %cst_6 : f32 to vector<6x10x16xf32>
    %29 = arith.select %26, %27, %28 : vector<6x10x16xi1>, vector<6x10x16xf32>
    %c0 = arith.constant 0 : index
    %c0_7 = arith.constant 0 : index
    %c0_8 = arith.constant 0 : index
    %c0_9 = arith.constant 0 : index
    %c0_10 = arith.constant 0 : index
    %30 = vector.load %arg2[%c0, %c0_7, %c0_8, %c0_9, %c0_10] : memref<1x3x6x10x16xf32, #tpu.memory_space<vmem>>, vector<1x1x6x10x16xf32>
    %31 = vector.shape_cast %30 : vector<1x1x6x10x16xf32> to vector<6x10x16xf32>
    %c0_11 = arith.constant 0 : index
    %c0_12 = arith.constant 0 : index
    %c0_13 = arith.constant 0 : index
    %c0_14 = arith.constant 0 : index
    %c0_15 = arith.constant 0 : index
    %32 = vector.load %arg3[%c0_11, %c0_12, %c0_13, %c0_14, %c0_15] : memref<1x3x1x10x16xf32, #tpu.memory_space<vmem>>, vector<1x1x1x10x16xf32>
    %33 = vector.shape_cast %32 : vector<1x1x1x10x16xf32> to vector<1x10x16xf32>
    %c0_16 = arith.constant 0 : index
    %c0_17 = arith.constant 0 : index
    %c0_18 = arith.constant 0 : index
    %c0_19 = arith.constant 0 : index
    %c0_20 = arith.constant 0 : index
    %34 = vector.load %arg4[%c0_16, %c0_17, %c0_18, %c0_19, %c0_20] : memref<1x3x1x10x16xf32, #tpu.memory_space<vmem>>, vector<1x1x1x10x16xf32>
    %35 = vector.shape_cast %34 : vector<1x1x1x10x16xf32> to vector<1x10x16xf32>
    %36 = tpu.concatenate %33, %31, %35 in 0 : vector<1x10x16xf32>, vector<6x10x16xf32>, vector<1x10x16xf32> -> vector<8x10x16xf32>
    %37 = vector.extract_strided_slice %36 {offsets = [2, 0, 0], sizes = [6, 10, 16], strides = [1, 1, 1]} : vector<8x10x16xf32> to vector<6x10x16xf32>
    %38 = vector.extract_strided_slice %36 {offsets = [0, 0, 0], sizes = [6, 10, 16], strides = [1, 1, 1]} : vector<8x10x16xf32> to vector<6x10x16xf32>
    %39 = arith.subf %37, %38 : vector<6x10x16xf32>
    %40 = arith.mulf %39, %11 : vector<6x10x16xf32>
    %41 = vector.extract_strided_slice %31 {offsets = [0, 0, 0], sizes = [6, 1, 16], strides = [1, 1, 1]} : vector<6x10x16xf32> to vector<6x1x16xf32>
    %42 = vector.extract_strided_slice %31 {offsets = [0, 0, 0], sizes = [6, 9, 16], strides = [1, 1, 1]} : vector<6x10x16xf32> to vector<6x9x16xf32>
    %43 = tpu.concatenate %41, %42 in 1 : vector<6x1x16xf32>, vector<6x9x16xf32> -> vector<6x10x16xf32>
    %44 = vector.extract_strided_slice %31 {offsets = [0, 1, 0], sizes = [6, 9, 16], strides = [1, 1, 1]} : vector<6x10x16xf32> to vector<6x9x16xf32>
    %45 = vector.extract_strided_slice %31 {offsets = [0, 9, 0], sizes = [6, 1, 16], strides = [1, 1, 1]} : vector<6x10x16xf32> to vector<6x1x16xf32>
    %46 = tpu.concatenate %44, %45 in 1 : vector<6x9x16xf32>, vector<6x1x16xf32> -> vector<6x10x16xf32>
    %47 = arith.subf %46, %43 : vector<6x10x16xf32>
    %48 = arith.mulf %47, %20 : vector<6x10x16xf32>
    %49 = vector.extract_strided_slice %31 {offsets = [0, 0, 0], sizes = [6, 10, 1], strides = [1, 1, 1]} : vector<6x10x16xf32> to vector<6x10x1xf32>
    %50 = vector.extract_strided_slice %31 {offsets = [0, 0, 0], sizes = [6, 10, 15], strides = [1, 1, 1]} : vector<6x10x16xf32> to vector<6x10x15xf32>
    %51 = tpu.concatenate %49, %50 in 2 : vector<6x10x1xf32>, vector<6x10x15xf32> -> vector<6x10x16xf32>
    %52 = vector.extract_strided_slice %31 {offsets = [0, 0, 1], sizes = [6, 10, 15], strides = [1, 1, 1]} : vector<6x10x16xf32> to vector<6x10x15xf32>
    %53 = vector.extract_strided_slice %31 {offsets = [0, 0, 15], sizes = [6, 10, 1], strides = [1, 1, 1]} : vector<6x10x16xf32> to vector<6x10x1xf32>
    %54 = tpu.concatenate %52, %53 in 2 : vector<6x10x15xf32>, vector<6x10x1xf32> -> vector<6x10x16xf32>
    %55 = arith.subf %54, %51 : vector<6x10x16xf32>
    %56 = arith.mulf %55, %29 : vector<6x10x16xf32>
    %c0_21 = arith.constant 0 : index
    %c1 = arith.constant 1 : index
    %c0_22 = arith.constant 0 : index
    %c0_23 = arith.constant 0 : index
    %c0_24 = arith.constant 0 : index
    %57 = vector.load %arg2[%c0_21, %c1, %c0_22, %c0_23, %c0_24] : memref<1x3x6x10x16xf32, #tpu.memory_space<vmem>>, vector<1x1x6x10x16xf32>
    %58 = vector.shape_cast %57 : vector<1x1x6x10x16xf32> to vector<6x10x16xf32>
    %c0_25 = arith.constant 0 : index
    %c1_26 = arith.constant 1 : index
    %c0_27 = arith.constant 0 : index
    %c0_28 = arith.constant 0 : index
    %c0_29 = arith.constant 0 : index
    %59 = vector.load %arg3[%c0_25, %c1_26, %c0_27, %c0_28, %c0_29] : memref<1x3x1x10x16xf32, #tpu.memory_space<vmem>>, vector<1x1x1x10x16xf32>
    %60 = vector.shape_cast %59 : vector<1x1x1x10x16xf32> to vector<1x10x16xf32>
    %c0_30 = arith.constant 0 : index
    %c1_31 = arith.constant 1 : index
    %c0_32 = arith.constant 0 : index
    %c0_33 = arith.constant 0 : index
    %c0_34 = arith.constant 0 : index
    %61 = vector.load %arg4[%c0_30, %c1_31, %c0_32, %c0_33, %c0_34] : memref<1x3x1x10x16xf32, #tpu.memory_space<vmem>>, vector<1x1x1x10x16xf32>
    %62 = vector.shape_cast %61 : vector<1x1x1x10x16xf32> to vector<1x10x16xf32>
    %63 = tpu.concatenate %60, %58, %62 in 0 : vector<1x10x16xf32>, vector<6x10x16xf32>, vector<1x10x16xf32> -> vector<8x10x16xf32>
    %64 = vector.extract_strided_slice %63 {offsets = [2, 0, 0], sizes = [6, 10, 16], strides = [1, 1, 1]} : vector<8x10x16xf32> to vector<6x10x16xf32>
    %65 = vector.extract_strided_slice %63 {offsets = [0, 0, 0], sizes = [6, 10, 16], strides = [1, 1, 1]} : vector<8x10x16xf32> to vector<6x10x16xf32>
    %66 = arith.subf %64, %65 : vector<6x10x16xf32>
    %67 = arith.mulf %66, %11 : vector<6x10x16xf32>
    %68 = vector.extract_strided_slice %58 {offsets = [0, 0, 0], sizes = [6, 1, 16], strides = [1, 1, 1]} : vector<6x10x16xf32> to vector<6x1x16xf32>
    %69 = vector.extract_strided_slice %58 {offsets = [0, 0, 0], sizes = [6, 9, 16], strides = [1, 1, 1]} : vector<6x10x16xf32> to vector<6x9x16xf32>
    %70 = tpu.concatenate %68, %69 in 1 : vector<6x1x16xf32>, vector<6x9x16xf32> -> vector<6x10x16xf32>
    %71 = vector.extract_strided_slice %58 {offsets = [0, 1, 0], sizes = [6, 9, 16], strides = [1, 1, 1]} : vector<6x10x16xf32> to vector<6x9x16xf32>
    %72 = vector.extract_strided_slice %58 {offsets = [0, 9, 0], sizes = [6, 1, 16], strides = [1, 1, 1]} : vector<6x10x16xf32> to vector<6x1x16xf32>
    %73 = tpu.concatenate %71, %72 in 1 : vector<6x9x16xf32>, vector<6x1x16xf32> -> vector<6x10x16xf32>
    %74 = arith.subf %73, %70 : vector<6x10x16xf32>
    %75 = arith.mulf %74, %20 : vector<6x10x16xf32>
    %76 = vector.extract_strided_slice %58 {offsets = [0, 0, 0], sizes = [6, 10, 1], strides = [1, 1, 1]} : vector<6x10x16xf32> to vector<6x10x1xf32>
    %77 = vector.extract_strided_slice %58 {offsets = [0, 0, 0], sizes = [6, 10, 15], strides = [1, 1, 1]} : vector<6x10x16xf32> to vector<6x10x15xf32>
    %78 = tpu.concatenate %76, %77 in 2 : vector<6x10x1xf32>, vector<6x10x15xf32> -> vector<6x10x16xf32>
    %79 = vector.extract_strided_slice %58 {offsets = [0, 0, 1], sizes = [6, 10, 15], strides = [1, 1, 1]} : vector<6x10x16xf32> to vector<6x10x15xf32>
    %80 = vector.extract_strided_slice %58 {offsets = [0, 0, 15], sizes = [6, 10, 1], strides = [1, 1, 1]} : vector<6x10x16xf32> to vector<6x10x1xf32>
    %81 = tpu.concatenate %79, %80 in 2 : vector<6x10x15xf32>, vector<6x10x1xf32> -> vector<6x10x16xf32>
    %82 = arith.subf %81, %78 : vector<6x10x16xf32>
    %83 = arith.mulf %82, %29 : vector<6x10x16xf32>
    %c0_35 = arith.constant 0 : index
    %c2 = arith.constant 2 : index
    %c0_36 = arith.constant 0 : index
    %c0_37 = arith.constant 0 : index
    %c0_38 = arith.constant 0 : index
    %84 = vector.load %arg2[%c0_35, %c2, %c0_36, %c0_37, %c0_38] : memref<1x3x6x10x16xf32, #tpu.memory_space<vmem>>, vector<1x1x6x10x16xf32>
    %85 = vector.shape_cast %84 : vector<1x1x6x10x16xf32> to vector<6x10x16xf32>
    %c0_39 = arith.constant 0 : index
    %c2_40 = arith.constant 2 : index
    %c0_41 = arith.constant 0 : index
    %c0_42 = arith.constant 0 : index
    %c0_43 = arith.constant 0 : index
    %86 = vector.load %arg3[%c0_39, %c2_40, %c0_41, %c0_42, %c0_43] : memref<1x3x1x10x16xf32, #tpu.memory_space<vmem>>, vector<1x1x1x10x16xf32>
    %87 = vector.shape_cast %86 : vector<1x1x1x10x16xf32> to vector<1x10x16xf32>
    %c0_44 = arith.constant 0 : index
    %c2_45 = arith.constant 2 : index
    %c0_46 = arith.constant 0 : index
    %c0_47 = arith.constant 0 : index
    %c0_48 = arith.constant 0 : index
    %88 = vector.load %arg4[%c0_44, %c2_45, %c0_46, %c0_47, %c0_48] : memref<1x3x1x10x16xf32, #tpu.memory_space<vmem>>, vector<1x1x1x10x16xf32>
    %89 = vector.shape_cast %88 : vector<1x1x1x10x16xf32> to vector<1x10x16xf32>
    %90 = tpu.concatenate %87, %85, %89 in 0 : vector<1x10x16xf32>, vector<6x10x16xf32>, vector<1x10x16xf32> -> vector<8x10x16xf32>
    %91 = vector.extract_strided_slice %90 {offsets = [2, 0, 0], sizes = [6, 10, 16], strides = [1, 1, 1]} : vector<8x10x16xf32> to vector<6x10x16xf32>
    %92 = vector.extract_strided_slice %90 {offsets = [0, 0, 0], sizes = [6, 10, 16], strides = [1, 1, 1]} : vector<8x10x16xf32> to vector<6x10x16xf32>
    %93 = arith.subf %91, %92 : vector<6x10x16xf32>
    %94 = arith.mulf %93, %11 : vector<6x10x16xf32>
    %95 = vector.extract_strided_slice %85 {offsets = [0, 0, 0], sizes = [6, 1, 16], strides = [1, 1, 1]} : vector<6x10x16xf32> to vector<6x1x16xf32>
    %96 = vector.extract_strided_slice %85 {offsets = [0, 0, 0], sizes = [6, 9, 16], strides = [1, 1, 1]} : vector<6x10x16xf32> to vector<6x9x16xf32>
    %97 = tpu.concatenate %95, %96 in 1 : vector<6x1x16xf32>, vector<6x9x16xf32> -> vector<6x10x16xf32>
    %98 = vector.extract_strided_slice %85 {offsets = [0, 1, 0], sizes = [6, 9, 16], strides = [1, 1, 1]} : vector<6x10x16xf32> to vector<6x9x16xf32>
    %99 = vector.extract_strided_slice %85 {offsets = [0, 9, 0], sizes = [6, 1, 16], strides = [1, 1, 1]} : vector<6x10x16xf32> to vector<6x1x16xf32>
    %100 = tpu.concatenate %98, %99 in 1 : vector<6x9x16xf32>, vector<6x1x16xf32> -> vector<6x10x16xf32>
    %101 = arith.subf %100, %97 : vector<6x10x16xf32>
    %102 = arith.mulf %101, %20 : vector<6x10x16xf32>
    %103 = vector.extract_strided_slice %85 {offsets = [0, 0, 0], sizes = [6, 10, 1], strides = [1, 1, 1]} : vector<6x10x16xf32> to vector<6x10x1xf32>
    %104 = vector.extract_strided_slice %85 {offsets = [0, 0, 0], sizes = [6, 10, 15], strides = [1, 1, 1]} : vector<6x10x16xf32> to vector<6x10x15xf32>
    %105 = tpu.concatenate %103, %104 in 2 : vector<6x10x1xf32>, vector<6x10x15xf32> -> vector<6x10x16xf32>
    %106 = vector.extract_strided_slice %85 {offsets = [0, 0, 1], sizes = [6, 10, 15], strides = [1, 1, 1]} : vector<6x10x16xf32> to vector<6x10x15xf32>
    %107 = vector.extract_strided_slice %85 {offsets = [0, 0, 15], sizes = [6, 10, 1], strides = [1, 1, 1]} : vector<6x10x16xf32> to vector<6x10x1xf32>
    %108 = tpu.concatenate %106, %107 in 2 : vector<6x10x15xf32>, vector<6x10x1xf32> -> vector<6x10x16xf32>
    %109 = arith.subf %108, %105 : vector<6x10x16xf32>
    %110 = arith.mulf %109, %29 : vector<6x10x16xf32>
    %111 = arith.addf %48, %67 : vector<6x10x16xf32>
    %cst_49 = arith.constant 5.000000e-01 : f32
    %112 = vector.broadcast %cst_49 : f32 to vector<6x10x16xf32>
    %113 = arith.mulf %112, %111 : vector<6x10x16xf32>
    %114 = arith.addf %56, %94 : vector<6x10x16xf32>
    %cst_50 = arith.constant 5.000000e-01 : f32
    %115 = vector.broadcast %cst_50 : f32 to vector<6x10x16xf32>
    %116 = arith.mulf %115, %114 : vector<6x10x16xf32>
    %117 = arith.addf %83, %102 : vector<6x10x16xf32>
    %cst_51 = arith.constant 5.000000e-01 : f32
    %118 = vector.broadcast %cst_51 : f32 to vector<6x10x16xf32>
    %119 = arith.mulf %118, %117 : vector<6x10x16xf32>
    %120 = arith.addf %40, %75 : vector<6x10x16xf32>
    %121 = arith.addf %120, %110 : vector<6x10x16xf32>
    %cst_52 = arith.constant 1.000000e+00 : f32
    %122 = vector.broadcast %cst_52 : f32 to vector<6x10x16xf32>
    %123 = arith.mulf %122, %121 : vector<6x10x16xf32>
    %124 = arith.mulf %123, %121 : vector<6x10x16xf32>
    %125 = arith.mulf %40, %40 : vector<6x10x16xf32>
    %126 = arith.mulf %75, %75 : vector<6x10x16xf32>
    %127 = arith.addf %125, %126 : vector<6x10x16xf32>
    %128 = arith.mulf %110, %110 : vector<6x10x16xf32>
    %129 = arith.addf %127, %128 : vector<6x10x16xf32>
    %130 = arith.mulf %113, %113 : vector<6x10x16xf32>
    %131 = arith.mulf %116, %116 : vector<6x10x16xf32>
    %132 = arith.addf %130, %131 : vector<6x10x16xf32>
    %133 = arith.mulf %119, %119 : vector<6x10x16xf32>
    %134 = arith.addf %132, %133 : vector<6x10x16xf32>
    %cst_53 = arith.constant 2.000000e+00 : f32
    %135 = vector.broadcast %cst_53 : f32 to vector<6x10x16xf32>
    %136 = arith.mulf %135, %134 : vector<6x10x16xf32>
    %137 = arith.addf %129, %136 : vector<6x10x16xf32>
    %cst_54 = arith.constant 1.500000e+00 : f32
    %138 = vector.broadcast %cst_54 : f32 to vector<6x10x16xf32>
    %139 = arith.mulf %138, %137 : vector<6x10x16xf32>
    %140 = arith.addf %124, %139 : vector<6x10x16xf32>
    %cst_55 = arith.constant dense<0.000000e+00> : vector<10x16xf32>
    %141 = vector.multi_reduction <add>, %140, %cst_55 [0] : vector<6x10x16xf32> to vector<10x16xf32>
    %cst_56 = arith.constant dense<0.000000e+00> : vector<16xf32>
    %142 = vector.multi_reduction <add>, %141, %cst_56 [0] : vector<10x16xf32> to vector<16xf32>
    %143 = vector.shape_cast %142 : vector<16xf32> to vector<1x16xf32>
    %cst_57 = arith.constant dense<0.000000e+00> : vector<1xf32>
    %144 = vector.multi_reduction <add>, %143, %cst_57 [1] : vector<1x16xf32> to vector<1xf32>
    %145 = vector.shape_cast %144 : vector<1xf32> to vector<1x1xf32>
    %c0_58 = arith.constant 0 : index
    %c0_59 = arith.constant 0 : index
    %c0_60 = arith.constant 0 : index
    %c0_61 = arith.constant 0 : index
    %146 = vector.load %arg5[%c0_58, %c0_59, %c0_60, %c0_61] : memref<1x1x1x1xf32, #tpu.memory_space<vmem>>, vector<1x1x1x1xf32>
    %147 = vector.shape_cast %146 : vector<1x1x1x1xf32> to vector<1x1xf32>
    %148 = vector.shape_cast %145 : vector<1x1xf32> to vector<1x1x1x1xf32>
    tpu.vector_store %arg5[%c0_58, %c0_59, %c0_60, %c0_61], %148 {strides = array<i32>} : memref<1x1x1x1xf32, #tpu.memory_space<vmem>>, vector<1x1x1x1xf32>,
    return
  }
  func.func @transform_0(%arg0: i32, %arg1: i32) -> (i32, i32, i32, i32, i32) {
    %c0_i32 = arith.constant 0 : i32
    %c0_i32_0 = arith.constant 0 : i32
    %c0_i32_1 = arith.constant 0 : i32
    %c0_i32_2 = arith.constant 0 : i32
    return %arg0, %c0_i32, %arg1, %c0_i32_0, %c0_i32_1 : i32, i32, i32, i32, i32
  }
  func.func @transform_1(%arg0: i32, %arg1: i32) -> (i32, i32, i32, i32, i32) {
    %c6_i32 = arith.constant 6 : i32
    %0 = arith.muli %arg1, %c6_i32 : i32
    %c1_i32 = arith.constant 1 : i32
    %1 = arith.subi %0, %c1_i32 : i32
    %c0_i32 = arith.constant 0 : i32
    %2 = arith.maxsi %1, %c0_i32 : i32
    %c0_i32_0 = arith.constant 0 : i32
    %c0_i32_1 = arith.constant 0 : i32
    %c0_i32_2 = arith.constant 0 : i32
    %c0_i32_3 = arith.constant 0 : i32
    return %arg0, %c0_i32_0, %2, %c0_i32_1, %c0_i32_2 : i32, i32, i32, i32, i32
  }
  func.func @transform_2(%arg0: i32, %arg1: i32) -> (i32, i32, i32, i32, i32) {
    %c1_i32 = arith.constant 1 : i32
    %0 = arith.addi %arg1, %c1_i32 : i32
    %c6_i32 = arith.constant 6 : i32
    %1 = arith.muli %0, %c6_i32 : i32
    %c11_i32 = arith.constant 11 : i32
    %2 = arith.minsi %1, %c11_i32 : i32
    %c0_i32 = arith.constant 0 : i32
    %c0_i32_0 = arith.constant 0 : i32
    %c0_i32_1 = arith.constant 0 : i32
    %c0_i32_2 = arith.constant 0 : i32
    return %arg0, %c0_i32, %2, %c0_i32_0, %c0_i32_1 : i32, i32, i32, i32, i32
  }
  func.func @transform_3(%arg0: i32, %arg1: i32) -> (i32, i32, i32, i32) {
    %c0_i32 = arith.constant 0 : i32
    %c0_i32_0 = arith.constant 0 : i32
    %c0_i32_1 = arith.constant 0 : i32
    return %arg0, %arg1, %c0_i32, %c0_i32_0 : i32, i32, i32, i32
  }
}

</mosaic_0001>

<llo_original>
// kernel: _lambda_.1
$region0: #{_lambda_.1}
  #allocation0 [shape = 'u32[]', space=smem, size = 0x4, offset = 0x4, fixed_abs, tag = 'smem constant byte address 0x4 - core index']
  #allocation1 [shape = 'u32[72,128]{1,0:T(1,128)}', space=vmem, size = 0x9000, scoped, tag = 'internal scratch']
  %s0 = inlined_call_operand.vmem [shape: f32[2,3,12,10,16], index: 0, kind: input, shape index: {}, may-alias: {0,1,2}]
  %s1 = inlined_call_operand.vmem [shape: f32[2,3,12,10,16], index: 1, kind: input, shape index: {}, may-alias: {0,1,2}]
  %s2 = inlined_call_operand.vmem [shape: f32[2,3,12,10,16], index: 2, kind: input, shape index: {}, may-alias: {0,1,2}]
  %s3 = inlined_call_operand.vmem [shape: f32[2,2,1,1], index: 3, kind: output, shape index: {}]
  %s4 = sld [smem:[#allocation0]]
  $region159: #{_lambda_.1} parent=0
    _
  %s6 = ssub.s32 1, %s4
  %s7 = scalar_select 0, %s6, %s4
  $region1: #{_lambda_.1} parent=0
    #allocation2 [shape = 'u8[294912]{0}', space=vmem, size = 0x48000, scoped, tag = 'input window, operand 0']
    #allocation3 [shape = 'u8[49152]{0}', space=vmem, size = 0xc000, scoped, tag = 'input window, operand 1']
    #allocation4 [shape = 'u8[49152]{0}', space=vmem, size = 0xc000, scoped, tag = 'input window, operand 2']
    loop: start=0, step=1, limit=6
    $region2: #{_lambda_.1} parent=1 // loop_pre_header
      _
    $region3: #{_lambda_.1} parent=1 // loop_header
      %s9 = sphi 0, %s13
      %p10 = scmp.ge.s32.totalorder %s9, 6
      %s16 = sphi 0, %s28
      %s17 = sphi 0, %s24
      %s18 = sphi 0, %s16
      %s19 = sphi 0, %s17
      %s20 = sphi 0, %s18
      %s21 = sphi 0, %s19
      %s33 = sphi 0, %s35
      %s36 = sphi 0, %s33
      %s37 = sphi 0, %s36
      %s53 = sphi 0, %s37
      %s69 = sphi 0, %s71
      %s72 = sphi 0, %s69
      %s73 = sphi 0, %s72
      %s89 = sphi 0, %s73
      %s105 = sphi 0, %s107
      %s108 = sphi 0, %s105
      %s109 = sphi 0, %s108
      %s125 = sphi 0, %s109
      %s133 = sphi 0, %s135
      %s136 = sphi 0, %s133
      %s137 = sphi 0, %s136
      %s153 = sphi 0, %s137
    $region4: #{_lambda_.1} parent=1 // loop_header_branch
      %12 = sbr.rel (%p10) target = $region8
    $region5: #{_lambda_.1} parent=1 // loop_body
      %s14 = ssub.s32 %s9, 1
      %s15 = ssub.s32 %s9, 2
      %s22 = sadd.s32 1, %s17
      %p23 = scmp.ge.s32.totalorder %s22, 2
      %s24 = scalar_select %p23, 0, %s22
      %s25 = sadd.s32 1, %s16
      %s26 = scalar_select %p23, %s25, %s16
      %p27 = scmp.ge.s32.totalorder %s26, 2
      %s28 = scalar_select %p27, 0, %s26
      %s29 = ssub.s32 %s16, %s28
      %s30 = ssub.s32 %s17, %s24
      %s31 = sor.u32 %s29, %s30
      %p32 = scmp.eq.s32.totalorder %s31, 0
      %s34 = sadd.s32 %s33, 1
      %s35 = scalar_select %p32, %s33, %s34
      %p38 = pneg %p32
      %p39 = scmp.eq.s32.totalorder %s9, 3
      %p40 = por %p38, %p39
      %p41 = scmp.ne.s32.totalorder %s33, %s36
      %p42 = scmp.eq.s32.totalorder %s9, 0
      %p43 = por %p41, %p42
      %p44 = scmp.ne.s32.totalorder %s33, %s36
      %p45 = scmp.eq.s32.totalorder %s14, 3
      %p46 = por %p44, %p45
      %p47 = scmp.ne.s32.totalorder %s36, %s37
      %p48 = scmp.eq.s32.totalorder %s14, 0
      %p49 = por %p47, %p48
      %p50 = scmp.ne.s32.totalorder %s36, %s37
      %p51 = scmp.eq.s32.totalorder %s15, 3
      %p52 = por %p50, %p51
      %p54 = scmp.ne.s32.totalorder %s37, %s53
      %p55 = scmp.eq.s32.totalorder %s15, 0
      %p56 = por %p54, %p55
      %s57 = smul.u32 %s17, 6
      %s58 = ssub.s32 %s57, 1
      %p59 = scmp.gt.s32.totalorder %s58, 0
      %s60 = scalar_select %p59, %s58, 0
      %s61 = smul.u32 %s24, 6
      %s62 = ssub.s32 %s61, 1
      %p63 = scmp.gt.s32.totalorder %s62, 0
      %s64 = scalar_select %p63, %s62, 0
      %s65 = ssub.s32 %s16, %s28
      %s66 = ssub.s32 %s60, %s64
      %s67 = sor.u32 %s65, %s66
      %p68 = scmp.eq.s32.totalorder %s67, 0
      %s70 = sadd.s32 %s69, 1
      %s71 = scalar_select %p68, %s69, %s70
      %p74 = pneg %p68
      %p75 = scmp.eq.s32.totalorder %s9, 3
      %p76 = por %p74, %p75
      %p77 = scmp.ne.s32.totalorder %s69, %s72
      %p78 = scmp.eq.s32.totalorder %s9, 0
      %p79 = por %p77, %p78
      %p80 = scmp.ne.s32.totalorder %s69, %s72
      %p81 = scmp.eq.s32.totalorder %s14, 3
      %p82 = por %p80, %p81
      %p83 = scmp.ne.s32.totalorder %s72, %s73
      %p84 = scmp.eq.s32.totalorder %s14, 0
      %p85 = por %p83, %p84
      %p86 = scmp.ne.s32.totalorder %s72, %s73
      %p87 = scmp.eq.s32.totalorder %s15, 3
      %p88 = por %p86, %p87
      %p90 = scmp.ne.s32.totalorder %s73, %s89
      %p91 = scmp.eq.s32.totalorder %s15, 0
      %p92 = por %p90, %p91
      %s93 = sadd.s32 %s17, 1
      %s94 = smul.u32 %s93, 6
      %p95 = scmp.lt.s32.totalorder %s94, 11
      %s96 = scalar_select %p95, %s94, 11
      %s97 = sadd.s32 %s24, 1
      %s98 = smul.u32 %s97, 6
      %p99 = scmp.lt.s32.totalorder %s98, 11
      %s100 = scalar_select %p99, %s98, 11
      %s101 = ssub.s32 %s16, %s28
      %s102 = ssub.s32 %s96, %s100
      %s103 = sor.u32 %s101, %s102
      %p104 = scmp.eq.s32.totalorder %s103, 0
      %s106 = sadd.s32 %s105, 1
      %s107 = scalar_select %p104, %s105, %s106
      %p110 = pneg %p104
      %p111 = scmp.eq.s32.totalorder %s9, 3
      %p112 = por %p110, %p111
      %p113 = scmp.ne.s32.totalorder %s105, %s108
      %p114 = scmp.eq.s32.totalorder %s9, 0
      %p115 = por %p113, %p114
      %p116 = scmp.ne.s32.totalorder %s105, %s108
      %p117 = scmp.eq.s32.totalorder %s14, 3
      %p118 = por %p116, %p117
      %p119 = scmp.ne.s32.totalorder %s108, %s109
      %p120 = scmp.eq.s32.totalorder %s14, 0
      %p121 = por %p119, %p120
      %p122 = scmp.ne.s32.totalorder %s108, %s109
      %p123 = scmp.eq.s32.totalorder %s15, 3
      %p124 = por %p122, %p123
      %p126 = scmp.ne.s32.totalorder %s109, %s125
      %p127 = scmp.eq.s32.totalorder %s15, 0
      %p128 = por %p126, %p127
      %s129 = ssub.s32 %s16, %s28
      %s130 = ssub.s32 %s17, %s24
      %s131 = sor.u32 %s129, %s130
      %p132 = scmp.eq.s32.totalorder %s131, 0
      %s134 = sadd.s32 %s133, 1
      %s135 = scalar_select %p132, %s133, %s134
      %p138 = pneg %p132
      %p139 = scmp.eq.s32.totalorder %s9, 3
      %p140 = por %p138, %p139
      %p141 = scmp.ne.s32.totalorder %s133, %s136
      %p142 = scmp.eq.s32.totalorder %s9, 0
      %p143 = por %p141, %p142
      %p144 = scmp.ne.s32.totalorder %s133, %s136
      %p145 = scmp.eq.s32.totalorder %s14, 3
      %p146 = por %p144, %p145
      %p147 = scmp.ne.s32.totalorder %s136, %s137
      %p148 = scmp.eq.s32.totalorder %s14, 0
      %p149 = por %p147, %p148
      %p150 = scmp.ne.s32.totalorder %s136, %s137
      %p151 = scmp.eq.s32.totalorder %s15, 3
      %p152 = por %p150, %p151
      %p154 = scmp.ne.s32.totalorder %s137, %s153
      %p155 = scmp.eq.s32.totalorder %s15, 0
      %p156 = por %p154, %p155
      %p157 = scmp.le.s32.totalorder 1, %s9
      %p158 = scmp.lt.s32.totalorder %s9, 5
      %p159 = pnand %p157, %p158
      %p160 = pneg %p159
      // Predicated region
      $region9: #{_lambda_.1} parent=5 // pred_check
        _
      $region10: #{_lambda_.1} parent=5 // pred_check_branch
        %162 = sbr.rel (%p159) target = $region12
      $region11: #{_lambda_.1} parent=5 // pred_region
        %s163 = ssub.s32 %s9, 1
      $region12: #{_lambda_.1} parent=5 // pred_fallthru
        _
      %p164 = scmp.lt.s32.totalorder %s9, 4
      // Predicated region
      $region13: #{_lambda_.1} parent=5 // pred_check
        %p165 = pneg %p164
      $region14: #{_lambda_.1} parent=5 // pred_check_branch
        %167 = sbr.rel (%p165) target = $region16
      $region15: #{_lambda_.1} parent=5 // pred_region
        // Predicated region
        $region17: #{_lambda_.1} parent=15 // pred_check
          %p168 = pneg %p43
        $region18: #{_lambda_.1} parent=15 // pred_check_branch
          %170 = sbr.rel (%p168) target = $region20
        $region19: #{_lambda_.1} parent=15 // pred_region
          %s171 = sand.u32 %s33, 1
          %s172 = sand.u32 %s33, 1
          %s173 = smul.addr %s172, 288
          %s174 = scalar_lea.vmem [#allocation2], %s173
          %s175 = smul.u32 6, %s17
          %s176 = smul.addr %s175, 2
          %s177 = smul.addr %s16, 72
          %s178 = sadd.s32 %s176, %s177
          %s179 = smul.addr %s178, 8
          %s180 = scalar_lea.vmem %s0, %s179
          // Predicated region
          $region21: #{_lambda_.1} parent=19 // pred_check
            _
          $region22: #{_lambda_.1} parent=19 // pred_check_branch
            %182 = sbr.rel (0) target = $region24
          $region23: #{_lambda_.1} parent=19 // pred_region
            // Predicated region
            $region25: #{_lambda_.1} parent=23 // pred_check
              _
            $region26: #{_lambda_.1} parent=23 // pred_check_branch
              %184 = sbr.rel (0) target = $region28
            $region27: #{_lambda_.1} parent=23 // pred_region
              // Predicated region
              $region40: #{_lambda_.1} parent=27 // pred_check
                _
              $region41: #{_lambda_.1} parent=27 // pred_check_branch
                %270 = sbr.rel (0) target = $region43
              $region42: #{_lambda_.1} parent=27 // pred_region
                loop: start=0, step=1, limit=1
                $region44: #{_lambda_.1} parent=42 // loop_pre_header
                  _
                $region45: #{_lambda_.1} parent=42 // loop_header
                  %s272 = sphi 0, %s276
                  %p273 = scmp.ge.s32.totalorder %s272, 1
                  %s277 = sphi %s180, %s180
                  %s278 = sphi %s174, %s174
                $region46: #{_lambda_.1} parent=42 // loop_header_branch
                  %275 = sbr.rel (%p273) target = $region50
                $region47: #{_lambda_.1} parent=42 // loop_body
                  %v279 = vld [vmem:[%s277] sm:$0xff]
                  %280 = vst [vmem:[%s278] sm:$0xff] %v279
                  %v281 = vld [vmem:[%s277 + $0x8] sm:$0xff]
                  %282 = vst [vmem:[%s278 + $0x8] sm:$0xff] %v281
                  %v283 = vld [vmem:[%s277 + $0x10] sm:$0xff]
                  %284 = vst [vmem:[%s278 + $0x10] sm:$0xff] %v283
                  %v285 = vld [vmem:[%s277 + $0x18] sm:$0xff]
                  %286 = vst [vmem:[%s278 + $0x18] sm:$0xff] %v285
                  %v287 = vld [vmem:[%s277 + $0x20] sm:$0xff]
                  %288 = vst [vmem:[%s278 + $0x20] sm:$0xff] %v287
                  %v289 = vld [vmem:[%s277 + $0x28] sm:$0xff]
                  %290 = vst [vmem:[%s278 + $0x28] sm:$0xff] %v289
                  %v291 = vld [vmem:[%s277 + $0x30] sm:$0xff]
                  %292 = vst [vmem:[%s278 + $0x30] sm:$0xff] %v291
                  %v293 = vld [vmem:[%s277 + $0x38] sm:$0xff]
                  %294 = vst [vmem:[%s278 + $0x38] sm:$0xff] %v293
                  %v295 = vld [vmem:[%s277 + $0x40] sm:$0xff]
                  %296 = vst [vmem:[%s278 + $0x40] sm:$0xff] %v295
                  %v297 = vld [vmem:[%s277 + $0x48] sm:$0xff]
                  %298 = vst [vmem:[%s278 + $0x48] sm:$0xff] %v297
                  %v299 = vld [vmem:[%s277 + $0x50] sm:$0xff]
                  %300 = vst [vmem:[%s278 + $0x50] sm:$0xff] %v299
                  %v301 = vld [vmem:[%s277 + $0x58] sm:$0xff]
                  %302 = vst [vmem:[%s278 + $0x58] sm:$0xff] %v301
                  %v303 = vld [vmem:[%s277 + $0xc0] sm:$0xff]
                  %304 = vst [vmem:[%s278 + $0x60] sm:$0xff] %v303
                  %v305 = vld [vmem:[%s277 + $0xc8] sm:$0xff]
                  %306 = vst [vmem:[%s278 + $0x68] sm:$0xff] %v305
                  %v307 = vld [vmem:[%s277 + $0xd0] sm:$0xff]
                  %308 = vst [vmem:[%s278 + $0x70] sm:$0xff] %v307
                  %v309 = vld [vmem:[%s277 + $0xd8] sm:$0xff]
                  %310 = vst [vmem:[%s278 + $0x78] sm:$0xff] %v309
                  %v311 = vld [vmem:[%s277 + $0xe0] sm:$0xff]
                  %312 = vst [vmem:[%s278 + $0x80] sm:$0xff] %v311
                  %v313 = vld [vmem:[%s277 + $0xe8] sm:$0xff]
                  %314 = vst [vmem:[%s278 + $0x88] sm:$0xff] %v313
                  %v315 = vld [vmem:[%s277 + $0xf0] sm:$0xff]
                  %316 = vst [vmem:[%s278 + $0x90] sm:$0xff] %v315
                  %v317 = vld [vmem:[%s277 + $0xf8] sm:$0xff]
                  %318 = vst [vmem:[%s278 + $0x98] sm:$0xff] %v317
                  %v319 = vld [vmem:[%s277 + $0x100] sm:$0xff]
                  %320 = vst [vmem:[%s278 + $0xa0] sm:$0xff] %v319
                  %v321 = vld [vmem:[%s277 + $0x108] sm:$0xff]
                  %322 = vst [vmem:[%s278 + $0xa8] sm:$0xff] %v321
                  %v323 = vld [vmem:[%s277 + $0x110] sm:$0xff]
                  %324 = vst [vmem:[%s278 + $0xb0] sm:$0xff] %v323
                  %v325 = vld [vmem:[%s277 + $0x118] sm:$0xff]
                  %326 = vst [vmem:[%s278 + $0xb8] sm:$0xff] %v325
                  %v327 = vld [vmem:[%s277 + $0x180] sm:$0xff]
                  %328 = vst [vmem:[%s278 + $0xc0] sm:$0xff] %v327
                  %v329 = vld [vmem:[%s277 + $0x188] sm:$0xff]
                  %330 = vst [vmem:[%s278 + $0xc8] sm:$0xff] %v329
                  %v331 = vld [vmem:[%s277 + $0x190] sm:$0xff]
                  %332 = vst [vmem:[%s278 + $0xd0] sm:$0xff] %v331
                  %v333 = vld [vmem:[%s277 + $0x198] sm:$0xff]
                  %334 = vst [vmem:[%s278 + $0xd8] sm:$0xff] %v333
                  %v335 = vld [vmem:[%s277 + $0x1a0] sm:$0xff]
                  %336 = vst [vmem:[%s278 + $0xe0] sm:$0xff] %v335
                  %v337 = vld [vmem:[%s277 + $0x1a8] sm:$0xff]
                  %338 = vst [vmem:[%s278 + $0xe8] sm:$0xff] %v337
                  %v339 = vld [vmem:[%s277 + $0x1b0] sm:$0xff]
                  %340 = vst [vmem:[%s278 + $0xf0] sm:$0xff] %v339
                  %v341 = vld [vmem:[%s277 + $0x1b8] sm:$0xff]
                  %342 = vst [vmem:[%s278 + $0xf8] sm:$0xff] %v341
                  %v343 = vld [vmem:[%s277 + $0x1c0] sm:$0xff]
                  %344 = vst [vmem:[%s278 + $0x100] sm:$0xff] %v343
                  %v345 = vld [vmem:[%s277 + $0x1c8] sm:$0xff]
                  %346 = vst [vmem:[%s278 + $0x108] sm:$0xff] %v345
                  %v347 = vld [vmem:[%s277 + $0x1d0] sm:$0xff]
                  %348 = vst [vmem:[%s278 + $0x110] sm:$0xff] %v347
                  %v349 = vld [vmem:[%s277 + $0x1d8] sm:$0xff]
                  %350 = vst [vmem:[%s278 + $0x118] sm:$0xff] %v349
                $region48: #{_lambda_.1} parent=42 // loop_footer
                  %s276 = sadd.s32 1, %s272
                $region49: #{_lambda_.1} parent=42 // loop_footer_branch
                  %271 = sbr.rel target = $region45
                $region50: #{_lambda_.1} parent=42 // loop_exit
                  _
              $region43: #{_lambda_.1} parent=27 // pred_fallthru
                _
              // Predicated region
              $region51: #{_lambda_.1} parent=27 // pred_check
                _
              $region52: #{_lambda_.1} parent=27 // pred_check_branch
                %352 = sbr.rel target = $region54
              $region53: #{_lambda_.1} parent=27 // pred_region
                _
              $region54: #{_lambda_.1} parent=27 // pred_fallthru
                _
            $region28: #{_lambda_.1} parent=23 // pred_fallthru
              _
            // Predicated region
            $region29: #{_lambda_.1} parent=23 // pred_check
              _
            $region30: #{_lambda_.1} parent=23 // pred_check_branch
              %186 = sbr.rel target = $region32
            $region31: #{_lambda_.1} parent=23 // pred_region
              %s188 = ssub.s32 256, 1
              loop: start=0, step=1, limit=1
              $region33: #{_lambda_.1} parent=31 // loop_pre_header
                _
              $region34: #{_lambda_.1} parent=31 // loop_header
                %s190 = sphi 0, %s194
                %p191 = scmp.ge.s32.totalorder %s190, 1
                %s195 = sphi %s180, %s180
                %s196 = sphi %s174, %s174
              $region35: #{_lambda_.1} parent=31 // loop_header_branch
                %193 = sbr.rel (%p191) target = $region39
              $region36: #{_lambda_.1} parent=31 // loop_body
                %v197 = vld [vmem:[%s195] sm:%s188]
                %198 = vst [vmem:[%s196] sm:%s188] %v197
                %v199 = vld [vmem:[%s195 + $0x8] sm:%s188]
                %200 = vst [vmem:[%s196 + $0x8] sm:%s188] %v199
                %v201 = vld [vmem:[%s195 + $0x10] sm:%s188]
                %202 = vst [vmem:[%s196 + $0x10] sm:%s188] %v201
                %v203 = vld [vmem:[%s195 + $0x18] sm:%s188]
                %204 = vst [vmem:[%s196 + $0x18] sm:%s188] %v203
                %v205 = vld [vmem:[%s195 + $0x20] sm:%s188]
                %206 = vst [vmem:[%s196 + $0x20] sm:%s188] %v205
                %v207 = vld [vmem:[%s195 + $0x28] sm:%s188]
                %208 = vst [vmem:[%s196 + $0x28] sm:%s188] %v207
                %v209 = vld [vmem:[%s195 + $0x30] sm:%s188]
                %210 = vst [vmem:[%s196 + $0x30] sm:%s188] %v209
                %v211 = vld [vmem:[%s195 + $0x38] sm:%s188]
                %212 = vst [vmem:[%s196 + $0x38] sm:%s188] %v211
                %v213 = vld [vmem:[%s195 + $0x40] sm:%s188]
                %214 = vst [vmem:[%s196 + $0x40] sm:%s188] %v213
                %v215 = vld [vmem:[%s195 + $0x48] sm:%s188]
                %216 = vst [vmem:[%s196 + $0x48] sm:%s188] %v215
                %v217 = vld [vmem:[%s195 + $0x50] sm:%s188]
                %218 = vst [vmem:[%s196 + $0x50] sm:%s188] %v217
                %v219 = vld [vmem:[%s195 + $0x58] sm:%s188]
                %220 = vst [vmem:[%s196 + $0x58] sm:%s188] %v219
                %v221 = vld [vmem:[%s195 + $0xc0] sm:%s188]
                %222 = vst [vmem:[%s196 + $0x60] sm:%s188] %v221
                %v223 = vld [vmem:[%s195 + $0xc8] sm:%s188]
                %224 = vst [vmem:[%s196 + $0x68] sm:%s188] %v223
                %v225 = vld [vmem:[%s195 + $0xd0] sm:%s188]
                %226 = vst [vmem:[%s196 + $0x70] sm:%s188] %v225
                %v227 = vld [vmem:[%s195 + $0xd8] sm:%s188]
                %228 = vst [vmem:[%s196 + $0x78] sm:%s188] %v227
                %v229 = vld [vmem:[%s195 + $0xe0] sm:%s188]
                %230 = vst [vmem:[%s196 + $0x80] sm:%s188] %v229
                %v231 = vld [vmem:[%s195 + $0xe8] sm:%s188]
                %232 = vst [vmem:[%s196 + $0x88] sm:%s188] %v231
                %v233 = vld [vmem:[%s195 + $0xf0] sm:%s188]
                %234 = vst [vmem:[%s196 + $0x90] sm:%s188] %v233
                %v235 = vld [vmem:[%s195 + $0xf8] sm:%s188]
                %236 = vst [vmem:[%s196 + $0x98] sm:%s188] %v235
                %v237 = vld [vmem:[%s195 + $0x100] sm:%s188]
                %238 = vst [vmem:[%s196 + $0xa0] sm:%s188] %v237
                %v239 = vld [vmem:[%s195 + $0x108] sm:%s188]
                %240 = vst [vmem:[%s196 + $0xa8] sm:%s188] %v239
                %v241 = vld [vmem:[%s195 + $0x110] sm:%s188]
                %242 = vst [vmem:[%s196 + $0xb0] sm:%s188] %v241
                %v243 = vld [vmem:[%s195 + $0x118] sm:%s188]
                %244 = vst [vmem:[%s196 + $0xb8] sm:%s188] %v243
                %v245 = vld [vmem:[%s195 + $0x180] sm:%s188]
                %246 = vst [vmem:[%s196 + $0xc0] sm:%s188] %v245
                %v247 = vld [vmem:[%s195 + $0x188] sm:%s188]
                %248 = vst [vmem:[%s196 + $0xc8] sm:%s188] %v247
                %v249 = vld [vmem:[%s195 + $0x190] sm:%s188]
                %250 = vst [vmem:[%s196 + $0xd0] sm:%s188] %v249
                %v251 = vld [vmem:[%s195 + $0x198] sm:%s188]
                %252 = vst [vmem:[%s196 + $0xd8] sm:%s188] %v251
                %v253 = vld [vmem:[%s195 + $0x1a0] sm:%s188]
                %254 = vst [vmem:[%s196 + $0xe0] sm:%s188] %v253
                %v255 = vld [vmem:[%s195 + $0x1a8] sm:%s188]
                %256 = vst [vmem:[%s196 + $0xe8] sm:%s188] %v255
                %v257 = vld [vmem:[%s195 + $0x1b0] sm:%s188]
                %258 = vst [vmem:[%s196 + $0xf0] sm:%s188] %v257
                %v259 = vld [vmem:[%s195 + $0x1b8] sm:%s188]
                %260 = vst [vmem:[%s196 + $0xf8] sm:%s188] %v259
                %v261 = vld [vmem:[%s195 + $0x1c0] sm:%s188]
                %262 = vst [vmem:[%s196 + $0x100] sm:%s188] %v261
                %v263 = vld [vmem:[%s195 + $0x1c8] sm:%s188]
                %264 = vst [vmem:[%s196 + $0x108] sm:%s188] %v263
                %v265 = vld [vmem:[%s195 + $0x1d0] sm:%s188]
                %266 = vst [vmem:[%s196 + $0x110] sm:%s188] %v265
                %v267 = vld [vmem:[%s195 + $0x1d8] sm:%s188]
                %268 = vst [vmem:[%s196 + $0x118] sm:%s188] %v267
              $region37: #{_lambda_.1} parent=31 // loop_footer
                %s194 = sadd.s32 1, %s190
              $region38: #{_lambda_.1} parent=31 // loop_footer_branch
                %189 = sbr.rel target = $region34
              $region39: #{_lambda_.1} parent=31 // loop_exit
                _
            $region32: #{_lambda_.1} parent=23 // pred_fallthru
              _
          $region24: #{_lambda_.1} parent=19 // pred_fallthru
            _
          %353 = vnop
        $region20: #{_lambda_.1} parent=15 // pred_fallthru
          _
        // Predicated region
        $region55: #{_lambda_.1} parent=15 // pred_check
          %p354 = pneg %p79
        $region56: #{_lambda_.1} parent=15 // pred_check_branch
          %356 = sbr.rel (%p354) target = $region58
        $region57: #{_lambda_.1} parent=15 // pred_region
          %s357 = sand.u32 %s69, 1
          %s358 = sand.u32 %s69, 1
          %s359 = smul.addr %s358, 48
          %s360 = scalar_lea.vmem [#allocation3], %s359
          %s361 = smul.u32 %s17, 6
          %s362 = ssub.s32 %s361, 1
          %p363 = scmp.gt.s32.totalorder %s362, 0
          %s364 = scalar_select %p363, %s362, 0
          %s365 = smul.addr %s364, 2
          %s366 = smul.addr %s16, 72
          %s367 = sadd.s32 %s365, %s366
          %s368 = smul.addr %s367, 8
          %s369 = scalar_lea.vmem %s1, %s368
          // Predicated region
          $region59: #{_lambda_.1} parent=57 // pred_check
            _
          $region60: #{_lambda_.1} parent=57 // pred_check_branch
            %371 = sbr.rel (0) target = $region62
          $region61: #{_lambda_.1} parent=57 // pred_region
            // Predicated region
            $region63: #{_lambda_.1} parent=61 // pred_check
              _
            $region64: #{_lambda_.1} parent=61 // pred_check_branch
              %373 = sbr.rel (0) target = $region66
            $region65: #{_lambda_.1} parent=61 // pred_region
              // Predicated region
              $region78: #{_lambda_.1} parent=65 // pred_check
                _
              $region79: #{_lambda_.1} parent=65 // pred_check_branch
                %399 = sbr.rel (0) target = $region81
              $region80: #{_lambda_.1} parent=65 // pred_region
                loop: start=0, step=1, limit=1
                $region82: #{_lambda_.1} parent=80 // loop_pre_header
                  _
                $region83: #{_lambda_.1} parent=80 // loop_header
                  %s401 = sphi 0, %s405
                  %p402 = scmp.ge.s32.totalorder %s401, 1
                  %s406 = sphi %s369, %s369
                  %s407 = sphi %s360, %s360
                $region84: #{_lambda_.1} parent=80 // loop_header_branch
                  %404 = sbr.rel (%p402) target = $region88
                $region85: #{_lambda_.1} parent=80 // loop_body
                  %v408 = vld [vmem:[%s406] sm:$0xff]
                  %409 = vst [vmem:[%s407] sm:$0xff] %v408
                  %v410 = vld [vmem:[%s406 + $0x8] sm:$0xff]
                  %411 = vst [vmem:[%s407 + $0x8] sm:$0xff] %v410
                  %v412 = vld [vmem:[%s406 + $0xc0] sm:$0xff]
                  %413 = vst [vmem:[%s407 + $0x10] sm:$0xff] %v412
                  %v414 = vld [vmem:[%s406 + $0xc8] sm:$0xff]
                  %415 = vst [vmem:[%s407 + $0x18] sm:$0xff] %v414
                  %v416 = vld [vmem:[%s406 + $0x180] sm:$0xff]
                  %417 = vst [vmem:[%s407 + $0x20] sm:$0xff] %v416
                  %v418 = vld [vmem:[%s406 + $0x188] sm:$0xff]
                  %419 = vst [vmem:[%s407 + $0x28] sm:$0xff] %v418
                $region86: #{_lambda_.1} parent=80 // loop_footer
                  %s405 = sadd.s32 1, %s401
                $region87: #{_lambda_.1} parent=80 // loop_footer_branch
                  %400 = sbr.rel target = $region83
                $region88: #{_lambda_.1} parent=80 // loop_exit
                  _
              $region81: #{_lambda_.1} parent=65 // pred_fallthru
                _
              // Predicated region
              $region89: #{_lambda_.1} parent=65 // pred_check
                _
              $region90: #{_lambda_.1} parent=65 // pred_check_branch
                %421 = sbr.rel target = $region92
              $region91: #{_lambda_.1} parent=65 // pred_region
                _
              $region92: #{_lambda_.1} parent=65 // pred_fallthru
                _
            $region66: #{_lambda_.1} parent=61 // pred_fallthru
              _
            // Predicated region
            $region67: #{_lambda_.1} parent=61 // pred_check
              _
            $region68: #{_lambda_.1} parent=61 // pred_check_branch
              %375 = sbr.rel target = $region70
            $region69: #{_lambda_.1} parent=61 // pred_region
              %s377 = ssub.s32 256, 1
              loop: start=0, step=1, limit=1
              $region71: #{_lambda_.1} parent=69 // loop_pre_header
                _
              $region72: #{_lambda_.1} parent=69 // loop_header
                %s379 = sphi 0, %s383
                %p380 = scmp.ge.s32.totalorder %s379, 1
                %s384 = sphi %s369, %s369
                %s385 = sphi %s360, %s360
              $region73: #{_lambda_.1} parent=69 // loop_header_branch
                %382 = sbr.rel (%p380) target = $region77
              $region74: #{_lambda_.1} parent=69 // loop_body
                %v386 = vld [vmem:[%s384] sm:%s377]
                %387 = vst [vmem:[%s385] sm:%s377] %v386
                %v388 = vld [vmem:[%s384 + $0x8] sm:%s377]
                %389 = vst [vmem:[%s385 + $0x8] sm:%s377] %v388
                %v390 = vld [vmem:[%s384 + $0xc0] sm:%s377]
                %391 = vst [vmem:[%s385 + $0x10] sm:%s377] %v390
                %v392 = vld [vmem:[%s384 + $0xc8] sm:%s377]
                %393 = vst [vmem:[%s385 + $0x18] sm:%s377] %v392
                %v394 = vld [vmem:[%s384 + $0x180] sm:%s377]
                %395 = vst [vmem:[%s385 + $0x20] sm:%s377] %v394
                %v396 = vld [vmem:[%s384 + $0x188] sm:%s377]
                %397 = vst [vmem:[%s385 + $0x28] sm:%s377] %v396
              $region75: #{_lambda_.1} parent=69 // loop_footer
                %s383 = sadd.s32 1, %s379
              $region76: #{_lambda_.1} parent=69 // loop_footer_branch
                %378 = sbr.rel target = $region72
              $region77: #{_lambda_.1} parent=69 // loop_exit
                _
            $region70: #{_lambda_.1} parent=61 // pred_fallthru
              _
          $region62: #{_lambda_.1} parent=57 // pred_fallthru
            _
          %422 = vnop
        $region58: #{_lambda_.1} parent=15 // pred_fallthru
          _
        // Predicated region
        $region93: #{_lambda_.1} parent=15 // pred_check
          %p423 = pneg %p115
        $region94: #{_lambda_.1} parent=15 // pred_check_branch
          %425 = sbr.rel (%p423) target = $region96
        $region95: #{_lambda_.1} parent=15 // pred_region
          %s426 = sand.u32 %s105, 1
          %s427 = sand.u32 %s105, 1
          %s428 = smul.addr %s427, 48
          %s429 = scalar_lea.vmem [#allocation4], %s428
          %s430 = sadd.s32 %s17, 1
          %s431 = smul.u32 %s430, 6
          %p432 = scmp.lt.s32.totalorder %s431, 11
          %s433 = scalar_select %p432, %s431, 11
          %s434 = smul.addr %s433, 2
          %s435 = smul.addr %s16, 72
          %s436 = sadd.s32 %s434, %s435
          %s437 = smul.addr %s436, 8
          %s438 = scalar_lea.vmem %s2, %s437
          // Predicated region
          $region97: #{_lambda_.1} parent=95 // pred_check
            _
          $region98: #{_lambda_.1} parent=95 // pred_check_branch
            %440 = sbr.rel (0) target = $region100
          $region99: #{_lambda_.1} parent=95 // pred_region
            // Predicated region
            $region101: #{_lambda_.1} parent=99 // pred_check
              _
            $region102: #{_lambda_.1} parent=99 // pred_check_branch
              %442 = sbr.rel (0) target = $region104
            $region103: #{_lambda_.1} parent=99 // pred_region
              // Predicated region
              $region116: #{_lambda_.1} parent=103 // pred_check
                _
              $region117: #{_lambda_.1} parent=103 // pred_check_branch
                %468 = sbr.rel (0) target = $region119
              $region118: #{_lambda_.1} parent=103 // pred_region
                loop: start=0, step=1, limit=1
                $region120: #{_lambda_.1} parent=118 // loop_pre_header
                  _
                $region121: #{_lambda_.1} parent=118 // loop_header
                  %s470 = sphi 0, %s474
                  %p471 = scmp.ge.s32.totalorder %s470, 1
                  %s475 = sphi %s438, %s438
                  %s476 = sphi %s429, %s429
                $region122: #{_lambda_.1} parent=118 // loop_header_branch
                  %473 = sbr.rel (%p471) target = $region126
                $region123: #{_lambda_.1} parent=118 // loop_body
                  %v477 = vld [vmem:[%s475] sm:$0xff]
                  %478 = vst [vmem:[%s476] sm:$0xff] %v477
                  %v479 = vld [vmem:[%s475 + $0x8] sm:$0xff]
                  %480 = vst [vmem:[%s476 + $0x8] sm:$0xff] %v479
                  %v481 = vld [vmem:[%s475 + $0xc0] sm:$0xff]
                  %482 = vst [vmem:[%s476 + $0x10] sm:$0xff] %v481
                  %v483 = vld [vmem:[%s475 + $0xc8] sm:$0xff]
                  %484 = vst [vmem:[%s476 + $0x18] sm:$0xff] %v483
                  %v485 = vld [vmem:[%s475 + $0x180] sm:$0xff]
                  %486 = vst [vmem:[%s476 + $0x20] sm:$0xff] %v485
                  %v487 = vld [vmem:[%s475 + $0x188] sm:$0xff]
                  %488 = vst [vmem:[%s476 + $0x28] sm:$0xff] %v487
                $region124: #{_lambda_.1} parent=118 // loop_footer
                  %s474 = sadd.s32 1, %s470
                $region125: #{_lambda_.1} parent=118 // loop_footer_branch
                  %469 = sbr.rel target = $region121
                $region126: #{_lambda_.1} parent=118 // loop_exit
                  _
              $region119: #{_lambda_.1} parent=103 // pred_fallthru
                _
              // Predicated region
              $region127: #{_lambda_.1} parent=103 // pred_check
                _
              $region128: #{_lambda_.1} parent=103 // pred_check_branch
                %490 = sbr.rel target = $region130
              $region129: #{_lambda_.1} parent=103 // pred_region
                _
              $region130: #{_lambda_.1} parent=103 // pred_fallthru
                _
            $region104: #{_lambda_.1} parent=99 // pred_fallthru
              _
            // Predicated region
            $region105: #{_lambda_.1} parent=99 // pred_check
              _
            $region106: #{_lambda_.1} parent=99 // pred_check_branch
              %444 = sbr.rel target = $region108
            $region107: #{_lambda_.1} parent=99 // pred_region
              %s446 = ssub.s32 256, 1
              loop: start=0, step=1, limit=1
              $region109: #{_lambda_.1} parent=107 // loop_pre_header
                _
              $region110: #{_lambda_.1} parent=107 // loop_header
                %s448 = sphi 0, %s452
                %p449 = scmp.ge.s32.totalorder %s448, 1
                %s453 = sphi %s438, %s438
                %s454 = sphi %s429, %s429
              $region111: #{_lambda_.1} parent=107 // loop_header_branch
                %451 = sbr.rel (%p449) target = $region115
              $region112: #{_lambda_.1} parent=107 // loop_body
                %v455 = vld [vmem:[%s453] sm:%s446]
                %456 = vst [vmem:[%s454] sm:%s446] %v455
                %v457 = vld [vmem:[%s453 + $0x8] sm:%s446]
                %458 = vst [vmem:[%s454 + $0x8] sm:%s446] %v457
                %v459 = vld [vmem:[%s453 + $0xc0] sm:%s446]
                %460 = vst [vmem:[%s454 + $0x10] sm:%s446] %v459
                %v461 = vld [vmem:[%s453 + $0xc8] sm:%s446]
                %462 = vst [vmem:[%s454 + $0x18] sm:%s446] %v461
                %v463 = vld [vmem:[%s453 + $0x180] sm:%s446]
                %464 = vst [vmem:[%s454 + $0x20] sm:%s446] %v463
                %v465 = vld [vmem:[%s453 + $0x188] sm:%s446]
                %466 = vst [vmem:[%s454 + $0x28] sm:%s446] %v465
              $region113: #{_lambda_.1} parent=107 // loop_footer
                %s452 = sadd.s32 1, %s448
              $region114: #{_lambda_.1} parent=107 // loop_footer_branch
                %447 = sbr.rel target = $region110
              $region115: #{_lambda_.1} parent=107 // loop_exit
                _
            $region108: #{_lambda_.1} parent=99 // pred_fallthru
              _
          $region100: #{_lambda_.1} parent=95 // pred_fallthru
            _
          %491 = vnop
        $region96: #{_lambda_.1} parent=15 // pred_fallthru
          _
      $region16: #{_lambda_.1} parent=5 // pred_fallthru
        _
      %p492 = scmp.le.s32.totalorder 1, %s9
      %p493 = scmp.lt.s32.totalorder %s9, 5
      %p494 = pnand %p492, %p493
      %p495 = pneg %p494
      // Predicated region
      $region131: #{_lambda_.1} parent=5 // pred_check
        _
      $region132: #{_lambda_.1} parent=5 // pred_check_branch
        %497 = sbr.rel (%p494) target = $region134
      $region133: #{_lambda_.1} parent=5 // pred_region
        %s498 = ssub.s32 %s9, 1
        %s499 = sand.u32 %s36, 1
        %s500 = sand.u32 %s36, 1
        %s501 = smul.addr %s500, 288
        %s502 = scalar_lea.vmem [#allocation2], %s501
        // Predicated region
        $region135: #{_lambda_.1} parent=133 // pred_check
          %p503 = pneg %p49
        $region136: #{_lambda_.1} parent=133 // pred_check_branch
          %505 = sbr.rel (%p503) target = $region138
        $region137: #{_lambda_.1} parent=133 // pred_region
          _
        $region138: #{_lambda_.1} parent=133 // pred_fallthru
          _
        %s506 = sand.u32 %s72, 1
        %s507 = sand.u32 %s72, 1
        %s508 = smul.addr %s507, 48
        %s509 = scalar_lea.vmem [#allocation3], %s508
        // Predicated region
        $region139: #{_lambda_.1} parent=133 // pred_check
          %p510 = pneg %p85
        $region140: #{_lambda_.1} parent=133 // pred_check_branch
          %512 = sbr.rel (%p510) target = $region142
        $region141: #{_lambda_.1} parent=133 // pred_region
          _
        $region142: #{_lambda_.1} parent=133 // pred_fallthru
          _
        %s513 = sand.u32 %s108, 1
        %s514 = sand.u32 %s108, 1
        %s515 = smul.addr %s514, 48
        %s516 = scalar_lea.vmem [#allocation4], %s515
        // Predicated region
        $region143: #{_lambda_.1} parent=133 // pred_check
          %p517 = pneg %p121
        $region144: #{_lambda_.1} parent=133 // pred_check_branch
          %519 = sbr.rel (%p517) target = $region146
        $region145: #{_lambda_.1} parent=133 // pred_region
          _
        $region146: #{_lambda_.1} parent=133 // pred_fallthru
          _
        %s520 = sand.u32 %s36, 1
        %s521 = sand.u32 %s36, 1
        %s522 = smul.addr %s521, 288
        %s523 = scalar_lea.vmem [#allocation2], %s522
        %p524 = pneg %p49
        %p525 = pneg %p46
        %s526 = sand.u32 %s72, 1
        %s527 = sand.u32 %s72, 1
        %s528 = smul.addr %s527, 48
        %s529 = scalar_lea.vmem [#allocation3], %s528
        %p530 = pneg %p85
        %p531 = pneg %p82
        %s532 = sand.u32 %s108, 1
        %s533 = sand.u32 %s108, 1
        %s534 = smul.addr %s533, 48
        %s535 = scalar_lea.vmem [#allocation4], %s534
        %p536 = pneg %p121
        %p537 = pneg %p118
        %p538 = pneg %p149
        %p539 = pneg %p146
        %p540 = scmp.lt.s32.totalorder %s18, 1
        %s541 = scalar_select %p540, %s18, 1
        %p542 = scmp.lt.s32.totalorder %s19, 1
        %s543 = scalar_select %p542, %s19, 1
        %s544 = smul.addr %s541, 2
        %s545 = sadd.s32 %s543, %s544
        %s546 = scalar_lea.vmem %s3, %s545
        %s547 = smul.u32 6, %s19
        %s548 = smul.u32 %s19, 6
        %s549 = ssub.s32 %s548, 1
        %p550 = scmp.gt.s32.totalorder %s549, 0
        %s551 = scalar_select %p550, %s549, 0
        %s552 = sadd.s32 %s19, 1
        %s553 = smul.u32 %s552, 6
        %p554 = scmp.lt.s32.totalorder %s553, 11
        %s555 = scalar_select %p554, %s553, 11
        %p556 = scmp.lt.s32.totalorder %s18, 1
        %s557 = scalar_select %p556, %s18, 1
        %p558 = scmp.lt.s32.totalorder %s19, 1
        %s559 = scalar_select %p558, %s19, 1
        %s560 = smul.addr %s557, 2
        %s561 = sadd.s32 %s559, %s560
        %s562 = scalar_lea.vmem %s3, %s561
        %s563 = smul.u32 %s19, 6
        %v564 = vstv %s563
        %v565 = vadd.s32 %v564, 1
        %v566 = vadd.s32 %v564, 2
        %v567 = vadd.s32 %v564, 3
        %v568 = vadd.s32 %v564, 4
        %v569 = vadd.s32 %v564, 5
        %vm570 = vcmp.eq.s32.totalorder %v564, 0
        %vm571 = vcmp.eq.s32.totalorder %v565, 0
        %vm572 = vcmp.eq.s32.totalorder %v566, 0
        %vm573 = vcmp.eq.s32.totalorder %v567, 0
        %vm574 = vcmp.eq.s32.totalorder %v568, 0
        %vm575 = vcmp.eq.s32.totalorder %v569, 0
        %vm576 = vcmp.eq.s32.totalorder %v564, 11
        %vm577 = vcmp.eq.s32.totalorder %v565, 11
        %vm578 = vcmp.eq.s32.totalorder %v566, 11
        %vm579 = vcmp.eq.s32.totalorder %v567, 11
        %vm580 = vcmp.eq.s32.totalorder %v568, 11
        %vm581 = vcmp.eq.s32.totalorder %v569, 11
        %vm582 = vmor %vm570, %vm576
        %vm583 = vmor %vm571, %vm577
        %vm584 = vmor %vm572, %vm578
        %vm585 = vmor %vm573, %vm579
        %vm586 = vmor %vm574, %vm580
        %vm587 = vmor %vm575, %vm581
        %v588 = vsel %vm582, 1.0, 0.5
        %v589 = vsel %vm583, 1.0, 0.5
        %v590 = vsel %vm584, 1.0, 0.5
        %v591 = vsel %vm585, 1.0, 0.5
        %v592 = vsel %vm586, 1.0, 0.5
        %v593 = vsel %vm587, 1.0, 0.5
        %v594 = vlaneseq
        %v595 = vshrl.u32 %v594, 7
        %v596 = vadd.s32 %v595, 8
        %vm597 = vcmp.eq.s32.totalorder %v595, 0
        %vm598 = vcmp.eq.s32.totalorder %v596, 0
        %vm599 = vcmp.eq.s32.totalorder %v595, 9
        %vm600 = vcmp.eq.s32.totalorder %v596, 9
        %vm601 = vmor %vm597, %vm599
        %vm602 = vmor %vm598, %vm600
        %v603 = vsel %vm601, 1.0, 0.5
        %v604 = vsel %vm602, 1.0, 0.5
        %v605 = vlaneseq
        %v606 = vand.u32 %v605, 127
        %vm607 = vcmp.eq.s32.totalorder %v606, 0
        %vm608 = vcmp.eq.s32.totalorder %v606, 15
        %vm609 = vmor %vm607, %vm608
        %v610 = vsel %vm609, 1.0, 0.5
        %v611 = vld [vmem:[%s502] sm:$0xff]
        %v612 = vld [vmem:[%s502 + $0x8] sm:$0x3]
        %v613 = vld [vmem:[%s502 + $0x10] sm:$0xff]
        %v614 = vld [vmem:[%s502 + $0x18] sm:$0x3]
        %v615 = vld [vmem:[%s502 + $0x20] sm:$0xff]
        %v616 = vld [vmem:[%s502 + $0x28] sm:$0x3]
        %v617 = vld [vmem:[%s502 + $0x30] sm:$0xff]
        %v618 = vld [vmem:[%s502 + $0x38] sm:$0x3]
        %v619 = vld [vmem:[%s502 + $0x40] sm:$0xff]
        %v620 = vld [vmem:[%s502 + $0x48] sm:$0x3]
        %v621 = vld [vmem:[%s502 + $0x50] sm:$0xff]
        %v622 = vld [vmem:[%s502 + $0x58] sm:$0x3]
        %v623 = vld [vmem:[%s509] sm:$0xff]
        %v624 = vld [vmem:[%s509 + $0x8] sm:$0x3]
        %v625 = vld [vmem:[%s516] sm:$0xff]
        %v626 = vld [vmem:[%s516 + $0x8] sm:$0x3]
        %v627 = vsub.f32 %v613, %v623
        %v628 = vsub.f32 %v614, %v624
        %v629 = vsub.f32 %v615, %v611
        %v630 = vsub.f32 %v616, %v612
        %v631 = vsub.f32 %v617, %v613
        %v632 = vsub.f32 %v618, %v614
        %v633 = vsub.f32 %v619, %v615
        %v634 = vsub.f32 %v620, %v616
        %v635 = vsub.f32 %v621, %v617
        %v636 = vsub.f32 %v622, %v618
        %v637 = vsub.f32 %v625, %v619
        %v638 = vsub.f32 %v626, %v620
        %v639 = vmul.f32 %v627, %v588
        %v640 = vmul.f32 %v628, %v588
        %v641 = vmul.f32 %v629, %v589
        %v642 = vmul.f32 %v630, %v589
        %v643 = vmul.f32 %v631, %v590
        %v644 = vmul.f32 %v632, %v590
        %v645 = vmul.f32 %v633, %v591
        %v646 = vmul.f32 %v634, %v591
        %v647 = vmul.f32 %v635, %v592
        %v648 = vmul.f32 %v636, %v592
        %v649 = vmul.f32 %v637, %v593
        %v650 = vmul.f32 %v638, %v593
        %vm663 = vcmask 1040384
        %v664 = vrot.slane %v611, 7
        %v665 = vrot.slane %v612, 7
        %v666 = vsel %vm663, %v664, %v665
        %v667 = vrot.slane %v613, 7
        %v668 = vrot.slane %v614, 7
        %v669 = vsel %vm663, %v667, %v668
        %v670 = vrot.slane %v615, 7
        %v671 = vrot.slane %v616, 7
        %v672 = vsel %vm663, %v670, %v671
        %v673 = vrot.slane %v617, 7
        %v674 = vrot.slane %v618, 7
        %v675 = vsel %vm663, %v673, %v674
        %v676 = vrot.slane %v619, 7
        %v677 = vrot.slane %v620, 7
        %v678 = vsel %vm663, %v676, %v677
        %v679 = vrot.slane %v621, 7
        %v680 = vrot.slane %v622, 7
        %v681 = vsel %vm663, %v679, %v680
        %v694 = vsel %vm663, %v611, %v664
        %v695 = vsel %vm663, %v613, %v667
        %v696 = vsel %vm663, %v615, %v670
        %v697 = vsel %vm663, %v617, %v673
        %v698 = vsel %vm663, %v619, %v676
        %v699 = vsel %vm663, %v621, %v679
        %vm700 = vcmask 1046528
        %v701 = vrot.slane %v611, 1
        %v702 = vrot.slane %v612, 1
        %v703 = vsel %vm700, %v701, %v702
        %v704 = vrot.slane %v613, 1
        %v705 = vrot.slane %v614, 1
        %v706 = vsel %vm700, %v704, %v705
        %v707 = vrot.slane %v615, 1
        %v708 = vrot.slane %v616, 1
        %v709 = vsel %vm700, %v707, %v708
        %v710 = vrot.slane %v617, 1
        %v711 = vrot.slane %v618, 1
        %v712 = vsel %vm700, %v710, %v711
        %v713 = vrot.slane %v619, 1
        %v714 = vrot.slane %v620, 1
        %v715 = vsel %vm700, %v713, %v714
        %v716 = vrot.slane %v621, 1
        %v717 = vrot.slane %v622, 1
        %v718 = vsel %vm700, %v716, %v717
        %v731 = vsel %vm663, %v702, %v612
        %v732 = vsel %vm663, %v705, %v614
        %v733 = vsel %vm663, %v708, %v616
        %v734 = vsel %vm663, %v711, %v618
        %v735 = vsel %vm663, %v714, %v620
        %v736 = vsel %vm663, %v717, %v622
        %v737 = vsub.f32 %v703, %v694
        %v738 = vsub.f32 %v731, %v666
        %v739 = vsub.f32 %v706, %v695
        %v740 = vsub.f32 %v732, %v669
        %v741 = vsub.f32 %v709, %v696
        %v742 = vsub.f32 %v733, %v672
        %v743 = vsub.f32 %v712, %v697
        %v744 = vsub.f32 %v734, %v675
        %v745 = vsub.f32 %v715, %v698
        %v746 = vsub.f32 %v735, %v678
        %v747 = vsub.f32 %v718, %v699
        %v748 = vsub.f32 %v736, %v681
        %v749 = vmul.f32 %v737, %v603
        %v750 = vmul.f32 %v738, %v604
        %v751 = vmul.f32 %v739, %v603
        %v752 = vmul.f32 %v740, %v604
        %v753 = vmul.f32 %v741, %v603
        %v754 = vmul.f32 %v742, %v604
        %v755 = vmul.f32 %v743, %v603
        %v756 = vmul.f32 %v744, %v604
        %v757 = vmul.f32 %v745, %v603
        %v758 = vmul.f32 %v746, %v604
        %v759 = vmul.f32 %v747, %v603
        %v760 = vmul.f32 %v748, %v604
        %761 = vrot.lane.b32.xlu0 %v611, 1
        %v762 = vpop.permute.xlu0 %761
        %763 = vrot.lane.b32.xlu0 %v612, 1
        %v764 = vpop.permute.xlu0 %763
        %765 = vrot.lane.b32.xlu0 %v613, 1
        %v766 = vpop.permute.xlu0 %765
        %767 = vrot.lane.b32.xlu0 %v614, 1
        %v768 = vpop.permute.xlu0 %767
        %769 = vrot.lane.b32.xlu0 %v615, 1
        %v770 = vpop.permute.xlu0 %769
        %771 = vrot.lane.b32.xlu0 %v616, 1
        %v772 = vpop.permute.xlu0 %771
        %773 = vrot.lane.b32.xlu0 %v617, 1
        %v774 = vpop.permute.xlu0 %773
        %775 = vrot.lane.b32.xlu0 %v618, 1
        %v776 = vpop.permute.xlu0 %775
        %777 = vrot.lane.b32.xlu0 %v619, 1
        %v778 = vpop.permute.xlu0 %777
        %779 = vrot.lane.b32.xlu0 %v620, 1
        %v780 = vpop.permute.xlu0 %779
        %781 = vrot.lane.b32.xlu0 %v621, 1
        %v782 = vpop.permute.xlu0 %781
        %783 = vrot.lane.b32.xlu0 %v622, 1
        %v784 = vpop.permute.xlu0 %783
        %vm797 = vcmask 7168
        %v798 = vsel %vm797, %v611, %v762
        %v799 = vsel %vm797, %v612, %v764
        %v800 = vsel %vm797, %v613, %v766
        %v801 = vsel %vm797, %v614, %v768
        %v802 = vsel %vm797, %v615, %v770
        %v803 = vsel %vm797, %v616, %v772
        %v804 = vsel %vm797, %v617, %v774
        %v805 = vsel %vm797, %v618, %v776
        %v806 = vsel %vm797, %v619, %v778
        %v807 = vsel %vm797, %v620, %v780
        %v808 = vsel %vm797, %v621, %v782
        %v809 = vsel %vm797, %v622, %v784
        %810 = vrot.lane.b32.xlu0 %v611, 127
        %v811 = vpop.permute.xlu0 %810
        %812 = vrot.lane.b32.xlu0 %v612, 127
        %v813 = vpop.permute.xlu0 %812
        %814 = vrot.lane.b32.xlu0 %v613, 127
        %v815 = vpop.permute.xlu0 %814
        %816 = vrot.lane.b32.xlu0 %v614, 127
        %v817 = vpop.permute.xlu0 %816
        %818 = vrot.lane.b32.xlu0 %v615, 127
        %v819 = vpop.permute.xlu0 %818
        %820 = vrot.lane.b32.xlu0 %v616, 127
        %v821 = vpop.permute.xlu0 %820
        %822 = vrot.lane.b32.xlu0 %v617, 127
        %v823 = vpop.permute.xlu0 %822
        %824 = vrot.lane.b32.xlu0 %v618, 127
        %v825 = vpop.permute.xlu0 %824
        %826 = vrot.lane.b32.xlu0 %v619, 127
        %v827 = vpop.permute.xlu0 %826
        %828 = vrot.lane.b32.xlu0 %v620, 127
        %v829 = vpop.permute.xlu0 %828
        %830 = vrot.lane.b32.xlu0 %v621, 127
        %v831 = vpop.permute.xlu0 %830
        %832 = vrot.lane.b32.xlu0 %v622, 127
        %v833 = vpop.permute.xlu0 %832
        %vm846 = vcmask 121856
        %v847 = vsel %vm846, %v811, %v611
        %v848 = vsel %vm846, %v813, %v612
        %v849 = vsel %vm846, %v815, %v613
        %v850 = vsel %vm846, %v817, %v614
        %v851 = vsel %vm846, %v819, %v615
        %v852 = vsel %vm846, %v821, %v616
        %v853 = vsel %vm846, %v823, %v617
        %v854 = vsel %vm846, %v825, %v618
        %v855 = vsel %vm846, %v827, %v619
        %v856 = vsel %vm846, %v829, %v620
        %v857 = vsel %vm846, %v831, %v621
        %v858 = vsel %vm846, %v833, %v622
        %v859 = vsub.f32 %v847, %v798
        %v860 = vsub.f32 %v848, %v799
        %v861 = vsub.f32 %v849, %v800
        %v862 = vsub.f32 %v850, %v801
        %v863 = vsub.f32 %v851, %v802
        %v864 = vsub.f32 %v852, %v803
        %v865 = vsub.f32 %v853, %v804
        %v866 = vsub.f32 %v854, %v805
        %v867 = vsub.f32 %v855, %v806
        %v868 = vsub.f32 %v856, %v807
        %v869 = vsub.f32 %v857, %v808
        %v870 = vsub.f32 %v858, %v809
        %v871 = vmul.f32 %v859, %v610
        %v872 = vmul.f32 %v860, %v610
        %v873 = vmul.f32 %v861, %v610
        %v874 = vmul.f32 %v862, %v610
        %v875 = vmul.f32 %v863, %v610
        %v876 = vmul.f32 %v864, %v610
        %v877 = vmul.f32 %v865, %v610
        %v878 = vmul.f32 %v866, %v610
        %v879 = vmul.f32 %v867, %v610
        %v880 = vmul.f32 %v868, %v610
        %v881 = vmul.f32 %v869, %v610
        %v882 = vmul.f32 %v870, %v610
        %s883 = scalar_lea.vmem %s502, 96 [#allocation2]
        %v884 = vld [vmem:[%s883] sm:$0xff]
        %v885 = vld [vmem:[%s883 + $0x8] sm:$0x3]
        %v886 = vld [vmem:[%s883 + $0x10] sm:$0xff]
        %v887 = vld [vmem:[%s883 + $0x18] sm:$0x3]
        %v888 = vld [vmem:[%s883 + $0x20] sm:$0xff]
        %v889 = vld [vmem:[%s883 + $0x28] sm:$0x3]
        %v890 = vld [vmem:[%s883 + $0x30] sm:$0xff]
        %v891 = vld [vmem:[%s883 + $0x38] sm:$0x3]
        %v892 = vld [vmem:[%s883 + $0x40] sm:$0xff]
        %v893 = vld [vmem:[%s883 + $0x48] sm:$0x3]
        %v894 = vld [vmem:[%s883 + $0x50] sm:$0xff]
        %v895 = vld [vmem:[%s883 + $0x58] sm:$0x3]
        %s896 = scalar_lea.vmem %s509, 16 [#allocation3]
        %v897 = vld [vmem:[%s896] sm:$0xff]
        %v898 = vld [vmem:[%s896 + $0x8] sm:$0x3]
        %s899 = scalar_lea.vmem %s516, 16 [#allocation4]
        %v900 = vld [vmem:[%s899] sm:$0xff]
        %v901 = vld [vmem:[%s899 + $0x8] sm:$0x3]
        %v902 = vsub.f32 %v886, %v897
        %v903 = vsub.f32 %v887, %v898
        %v904 = vsub.f32 %v888, %v884
        %v905 = vsub.f32 %v889, %v885
        %v906 = vsub.f32 %v890, %v886
        %v907 = vsub.f32 %v891, %v887
        %v908 = vsub.f32 %v892, %v888
        %v909 = vsub.f32 %v893, %v889
        %v910 = vsub.f32 %v894, %v890
        %v911 = vsub.f32 %v895, %v891
        %v912 = vsub.f32 %v900, %v892
        %v913 = vsub.f32 %v901, %v893
        %v914 = vmul.f32 %v902, %v588
        %v915 = vmul.f32 %v903, %v588
        %v916 = vmul.f32 %v904, %v589
        %v917 = vmul.f32 %v905, %v589
        %v918 = vmul.f32 %v906, %v590
        %v919 = vmul.f32 %v907, %v590
        %v920 = vmul.f32 %v908, %v591
        %v921 = vmul.f32 %v909, %v591
        %v922 = vmul.f32 %v910, %v592
        %v923 = vmul.f32 %v911, %v592
        %v924 = vmul.f32 %v912, %v593
        %v925 = vmul.f32 %v913, %v593
        %v938 = vrot.slane %v884, 7
        %v939 = vrot.slane %v885, 7
        %v940 = vsel %vm663, %v938, %v939
        %v941 = vrot.slane %v886, 7
        %v942 = vrot.slane %v887, 7
        %v943 = vsel %vm663, %v941, %v942
        %v944 = vrot.slane %v888, 7
        %v945 = vrot.slane %v889, 7
        %v946 = vsel %vm663, %v944, %v945
        %v947 = vrot.slane %v890, 7
        %v948 = vrot.slane %v891, 7
        %v949 = vsel %vm663, %v947, %v948
        %v950 = vrot.slane %v892, 7
        %v951 = vrot.slane %v893, 7
        %v952 = vsel %vm663, %v950, %v951
        %v953 = vrot.slane %v894, 7
        %v954 = vrot.slane %v895, 7
        %v955 = vsel %vm663, %v953, %v954
        %v968 = vsel %vm663, %v884, %v938
        %v969 = vsel %vm663, %v886, %v941
        %v970 = vsel %vm663, %v888, %v944
        %v971 = vsel %vm663, %v890, %v947
        %v972 = vsel %vm663, %v892, %v950
        %v973 = vsel %vm663, %v894, %v953
        %v974 = vrot.slane %v884, 1
        %v975 = vrot.slane %v885, 1
        %v976 = vsel %vm700, %v974, %v975
        %v977 = vrot.slane %v886, 1
        %v978 = vrot.slane %v887, 1
        %v979 = vsel %vm700, %v977, %v978
        %v980 = vrot.slane %v888, 1
        %v981 = vrot.slane %v889, 1
        %v982 = vsel %vm700, %v980, %v981
        %v983 = vrot.slane %v890, 1
        %v984 = vrot.slane %v891, 1
        %v985 = vsel %vm700, %v983, %v984
        %v986 = vrot.slane %v892, 1
        %v987 = vrot.slane %v893, 1
        %v988 = vsel %vm700, %v986, %v987
        %v989 = vrot.slane %v894, 1
        %v990 = vrot.slane %v895, 1
        %v991 = vsel %vm700, %v989, %v990
        %v1004 = vsel %vm663, %v975, %v885
        %v1005 = vsel %vm663, %v978, %v887
        %v1006 = vsel %vm663, %v981, %v889
        %v1007 = vsel %vm663, %v984, %v891
        %v1008 = vsel %vm663, %v987, %v893
        %v1009 = vsel %vm663, %v990, %v895
        %v1010 = vsub.f32 %v976, %v968
        %v1011 = vsub.f32 %v1004, %v940
        %v1012 = vsub.f32 %v979, %v969
        %v1013 = vsub.f32 %v1005, %v943
        %v1014 = vsub.f32 %v982, %v970
        %v1015 = vsub.f32 %v1006, %v946
        %v1016 = vsub.f32 %v985, %v971
        %v1017 = vsub.f32 %v1007, %v949
        %v1018 = vsub.f32 %v988, %v972
        %v1019 = vsub.f32 %v1008, %v952
        %v1020 = vsub.f32 %v991, %v973
        %v1021 = vsub.f32 %v1009, %v955
        %v1022 = vmul.f32 %v1010, %v603
        %v1023 = vmul.f32 %v1011, %v604
        %v1024 = vmul.f32 %v1012, %v603
        %v1025 = vmul.f32 %v1013, %v604
        %v1026 = vmul.f32 %v1014, %v603
        %v1027 = vmul.f32 %v1015, %v604
        %v1028 = vmul.f32 %v1016, %v603
        %v1029 = vmul.f32 %v1017, %v604
        %v1030 = vmul.f32 %v1018, %v603
        %v1031 = vmul.f32 %v1019, %v604
        %v1032 = vmul.f32 %v1020, %v603
        %v1033 = vmul.f32 %v1021, %v604
        %1034 = vrot.lane.b32.xlu0 %v884, 1
        %v1035 = vpop.permute.xlu0 %1034
        %1036 = vrot.lane.b32.xlu0 %v885, 1
        %v1037 = vpop.permute.xlu0 %1036
        %1038 = vrot.lane.b32.xlu0 %v886, 1
        %v1039 = vpop.permute.xlu0 %1038
        %1040 = vrot.lane.b32.xlu0 %v887, 1
        %v1041 = vpop.permute.xlu0 %1040
        %1042 = vrot.lane.b32.xlu0 %v888, 1
        %v1043 = vpop.permute.xlu0 %1042
        %1044 = vrot.lane.b32.xlu0 %v889, 1
        %v1045 = vpop.permute.xlu0 %1044
        %1046 = vrot.lane.b32.xlu0 %v890, 1
        %v1047 = vpop.permute.xlu0 %1046
        %1048 = vrot.lane.b32.xlu0 %v891, 1
        %v1049 = vpop.permute.xlu0 %1048
        %1050 = vrot.lane.b32.xlu0 %v892, 1
        %v1051 = vpop.permute.xlu0 %1050
        %1052 = vrot.lane.b32.xlu0 %v893, 1
        %v1053 = vpop.permute.xlu0 %1052
        %1054 = vrot.lane.b32.xlu0 %v894, 1
        %v1055 = vpop.permute.xlu0 %1054
        %1056 = vrot.lane.b32.xlu0 %v895, 1
        %v1057 = vpop.permute.xlu0 %1056
        %v1070 = vsel %vm797, %v884, %v1035
        %v1071 = vsel %vm797, %v885, %v1037
        %v1072 = vsel %vm797, %v886, %v1039
        %v1073 = vsel %vm797, %v887, %v1041
        %v1074 = vsel %vm797, %v888, %v1043
        %v1075 = vsel %vm797, %v889, %v1045
        %v1076 = vsel %vm797, %v890, %v1047
        %v1077 = vsel %vm797, %v891, %v1049
        %v1078 = vsel %vm797, %v892, %v1051
        %v1079 = vsel %vm797, %v893, %v1053
        %v1080 = vsel %vm797, %v894, %v1055
        %v1081 = vsel %vm797, %v895, %v1057
        %1082 = vrot.lane.b32.xlu0 %v884, 127
        %v1083 = vpop.permute.xlu0 %1082
        %1084 = vrot.lane.b32.xlu0 %v885, 127
        %v1085 = vpop.permute.xlu0 %1084
        %1086 = vrot.lane.b32.xlu0 %v886, 127
        %v1087 = vpop.permute.xlu0 %1086
        %1088 = vrot.lane.b32.xlu0 %v887, 127
        %v1089 = vpop.permute.xlu0 %1088
        %1090 = vrot.lane.b32.xlu0 %v888, 127
        %v1091 = vpop.permute.xlu0 %1090
        %1092 = vrot.lane.b32.xlu0 %v889, 127
        %v1093 = vpop.permute.xlu0 %1092
        %1094 = vrot.lane.b32.xlu0 %v890, 127
        %v1095 = vpop.permute.xlu0 %1094
        %1096 = vrot.lane.b32.xlu0 %v891, 127
        %v1097 = vpop.permute.xlu0 %1096
        %1098 = vrot.lane.b32.xlu0 %v892, 127
        %v1099 = vpop.permute.xlu0 %1098
        %1100 = vrot.lane.b32.xlu0 %v893, 127
        %v1101 = vpop.permute.xlu0 %1100
        %1102 = vrot.lane.b32.xlu0 %v894, 127
        %v1103 = vpop.permute.xlu0 %1102
        %1104 = vrot.lane.b32.xlu0 %v895, 127
        %v1105 = vpop.permute.xlu0 %1104
        %v1118 = vsel %vm846, %v1083, %v884
        %v1119 = vsel %vm846, %v1085, %v885
        %v1120 = vsel %vm846, %v1087, %v886
        %v1121 = vsel %vm846, %v1089, %v887
        %v1122 = vsel %vm846, %v1091, %v888
        %v1123 = vsel %vm846, %v1093, %v889
        %v1124 = vsel %vm846, %v1095, %v890
        %v1125 = vsel %vm846, %v1097, %v891
        %v1126 = vsel %vm846, %v1099, %v892
        %v1127 = vsel %vm846, %v1101, %v893
        %v1128 = vsel %vm846, %v1103, %v894
        %v1129 = vsel %vm846, %v1105, %v895
        %v1130 = vsub.f32 %v1118, %v1070
        %v1131 = vsub.f32 %v1119, %v1071
        %v1132 = vsub.f32 %v1120, %v1072
        %v1133 = vsub.f32 %v1121, %v1073
        %v1134 = vsub.f32 %v1122, %v1074
        %v1135 = vsub.f32 %v1123, %v1075
        %v1136 = vsub.f32 %v1124, %v1076
        %v1137 = vsub.f32 %v1125, %v1077
        %v1138 = vsub.f32 %v1126, %v1078
        %v1139 = vsub.f32 %v1127, %v1079
        %v1140 = vsub.f32 %v1128, %v1080
        %v1141 = vsub.f32 %v1129, %v1081
        %v1142 = vmul.f32 %v1130, %v610
        %v1143 = vmul.f32 %v1131, %v610
        %v1144 = vmul.f32 %v1132, %v610
        %v1145 = vmul.f32 %v1133, %v610
        %v1146 = vmul.f32 %v1134, %v610
        %v1147 = vmul.f32 %v1135, %v610
        %v1148 = vmul.f32 %v1136, %v610
        %v1149 = vmul.f32 %v1137, %v610
        %v1150 = vmul.f32 %v1138, %v610
        %v1151 = vmul.f32 %v1139, %v610
        %v1152 = vmul.f32 %v1140, %v610
        %v1153 = vmul.f32 %v1141, %v610
        %s1154 = scalar_lea.vmem %s502, 192 [#allocation2]
        %v1155 = vld [vmem:[%s1154] sm:$0xff]
        %v1156 = vld [vmem:[%s1154 + $0x8] sm:$0x3]
        %v1157 = vld [vmem:[%s1154 + $0x10] sm:$0xff]
        %v1158 = vld [vmem:[%s1154 + $0x18] sm:$0x3]
        %v1159 = vld [vmem:[%s1154 + $0x20] sm:$0xff]
        %v1160 = vld [vmem:[%s1154 + $0x28] sm:$0x3]
        %v1161 = vld [vmem:[%s1154 + $0x30] sm:$0xff]
        %v1162 = vld [vmem:[%s1154 + $0x38] sm:$0x3]
        %v1163 = vld [vmem:[%s1154 + $0x40] sm:$0xff]
        %v1164 = vld [vmem:[%s1154 + $0x48] sm:$0x3]
        %v1165 = vld [vmem:[%s1154 + $0x50] sm:$0xff]
        %v1166 = vld [vmem:[%s1154 + $0x58] sm:$0x3]
        %s1167 = scalar_lea.vmem %s509, 32 [#allocation3]
        %v1168 = vld [vmem:[%s1167] sm:$0xff]
        %v1169 = vld [vmem:[%s1167 + $0x8] sm:$0x3]
        %s1170 = scalar_lea.vmem %s516, 32 [#allocation4]
        %v1171 = vld [vmem:[%s1170] sm:$0xff]
        %v1172 = vld [vmem:[%s1170 + $0x8] sm:$0x3]
        %v1173 = vsub.f32 %v1157, %v1168
        %v1174 = vsub.f32 %v1158, %v1169
        %v1175 = vsub.f32 %v1159, %v1155
        %v1176 = vsub.f32 %v1160, %v1156
        %v1177 = vsub.f32 %v1161, %v1157
        %v1178 = vsub.f32 %v1162, %v1158
        %v1179 = vsub.f32 %v1163, %v1159
        %v1180 = vsub.f32 %v1164, %v1160
        %v1181 = vsub.f32 %v1165, %v1161
        %v1182 = vsub.f32 %v1166, %v1162
        %v1183 = vsub.f32 %v1171, %v1163
        %v1184 = vsub.f32 %v1172, %v1164
        %v1185 = vmul.f32 %v1173, %v588
        %v1186 = vmul.f32 %v1174, %v588
        %v1187 = vmul.f32 %v1175, %v589
        %v1188 = vmul.f32 %v1176, %v589
        %v1189 = vmul.f32 %v1177, %v590
        %v1190 = vmul.f32 %v1178, %v590
        %v1191 = vmul.f32 %v1179, %v591
        %v1192 = vmul.f32 %v1180, %v591
        %v1193 = vmul.f32 %v1181, %v592
        %v1194 = vmul.f32 %v1182, %v592
        %v1195 = vmul.f32 %v1183, %v593
        %v1196 = vmul.f32 %v1184, %v593
        %v1209 = vrot.slane %v1155, 7
        %v1210 = vrot.slane %v1156, 7
        %v1211 = vsel %vm663, %v1209, %v1210
        %v1212 = vrot.slane %v1157, 7
        %v1213 = vrot.slane %v1158, 7
        %v1214 = vsel %vm663, %v1212, %v1213
        %v1215 = vrot.slane %v1159, 7
        %v1216 = vrot.slane %v1160, 7
        %v1217 = vsel %vm663, %v1215, %v1216
        %v1218 = vrot.slane %v1161, 7
        %v1219 = vrot.slane %v1162, 7
        %v1220 = vsel %vm663, %v1218, %v1219
        %v1221 = vrot.slane %v1163, 7
        %v1222 = vrot.slane %v1164, 7
        %v1223 = vsel %vm663, %v1221, %v1222
        %v1224 = vrot.slane %v1165, 7
        %v1225 = vrot.slane %v1166, 7
        %v1226 = vsel %vm663, %v1224, %v1225
        %v1239 = vsel %vm663, %v1155, %v1209
        %v1240 = vsel %vm663, %v1157, %v1212
        %v1241 = vsel %vm663, %v1159, %v1215
        %v1242 = vsel %vm663, %v1161, %v1218
        %v1243 = vsel %vm663, %v1163, %v1221
        %v1244 = vsel %vm663, %v1165, %v1224
        %v1245 = vrot.slane %v1155, 1
        %v1246 = vrot.slane %v1156, 1
        %v1247 = vsel %vm700, %v1245, %v1246
        %v1248 = vrot.slane %v1157, 1
        %v1249 = vrot.slane %v1158, 1
        %v1250 = vsel %vm700, %v1248, %v1249
        %v1251 = vrot.slane %v1159, 1
        %v1252 = vrot.slane %v1160, 1
        %v1253 = vsel %vm700, %v1251, %v1252
        %v1254 = vrot.slane %v1161, 1
        %v1255 = vrot.slane %v1162, 1
        %v1256 = vsel %vm700, %v1254, %v1255
        %v1257 = vrot.slane %v1163, 1
        %v1258 = vrot.slane %v1164, 1
        %v1259 = vsel %vm700, %v1257, %v1258
        %v1260 = vrot.slane %v1165, 1
        %v1261 = vrot.slane %v1166, 1
        %v1262 = vsel %vm700, %v1260, %v1261
        %v1275 = vsel %vm663, %v1246, %v1156
        %v1276 = vsel %vm663, %v1249, %v1158
        %v1277 = vsel %vm663, %v1252, %v1160
        %v1278 = vsel %vm663, %v1255, %v1162
        %v1279 = vsel %vm663, %v1258, %v1164
        %v1280 = vsel %vm663, %v1261, %v1166
        %v1281 = vsub.f32 %v1247, %v1239
        %v1282 = vsub.f32 %v1275, %v1211
        %v1283 = vsub.f32 %v1250, %v1240
        %v1284 = vsub.f32 %v1276, %v1214
        %v1285 = vsub.f32 %v1253, %v1241
        %v1286 = vsub.f32 %v1277, %v1217
        %v1287 = vsub.f32 %v1256, %v1242
        %v1288 = vsub.f32 %v1278, %v1220
        %v1289 = vsub.f32 %v1259, %v1243
        %v1290 = vsub.f32 %v1279, %v1223
        %v1291 = vsub.f32 %v1262, %v1244
        %v1292 = vsub.f32 %v1280, %v1226
        %v1293 = vmul.f32 %v1281, %v603
        %v1294 = vmul.f32 %v1282, %v604
        %v1295 = vmul.f32 %v1283, %v603
        %v1296 = vmul.f32 %v1284, %v604
        %v1297 = vmul.f32 %v1285, %v603
        %v1298 = vmul.f32 %v1286, %v604
        %v1299 = vmul.f32 %v1287, %v603
        %v1300 = vmul.f32 %v1288, %v604
        %v1301 = vmul.f32 %v1289, %v603
        %v1302 = vmul.f32 %v1290, %v604
        %v1303 = vmul.f32 %v1291, %v603
        %v1304 = vmul.f32 %v1292, %v604
        %1305 = vrot.lane.b32.xlu0 %v1155, 1
        %v1306 = vpop.permute.xlu0 %1305
        %1307 = vrot.lane.b32.xlu0 %v1156, 1
        %v1308 = vpop.permute.xlu0 %1307
        %1309 = vrot.lane.b32.xlu0 %v1157, 1
        %v1310 = vpop.permute.xlu0 %1309
        %1311 = vrot.lane.b32.xlu0 %v1158, 1
        %v1312 = vpop.permute.xlu0 %1311
        %1313 = vrot.lane.b32.xlu0 %v1159, 1
        %v1314 = vpop.permute.xlu0 %1313
        %1315 = vrot.lane.b32.xlu0 %v1160, 1
        %v1316 = vpop.permute.xlu0 %1315
        %1317 = vrot.lane.b32.xlu0 %v1161, 1
        %v1318 = vpop.permute.xlu0 %1317
        %1319 = vrot.lane.b32.xlu0 %v1162, 1
        %v1320 = vpop.permute.xlu0 %1319
        %1321 = vrot.lane.b32.xlu0 %v1163, 1
        %v1322 = vpop.permute.xlu0 %1321
        %1323 = vrot.lane.b32.xlu0 %v1164, 1
        %v1324 = vpop.permute.xlu0 %1323
        %1325 = vrot.lane.b32.xlu0 %v1165, 1
        %v1326 = vpop.permute.xlu0 %1325
        %1327 = vrot.lane.b32.xlu0 %v1166, 1
        %v1328 = vpop.permute.xlu0 %1327
        %v1341 = vsel %vm797, %v1155, %v1306
        %v1342 = vsel %vm797, %v1156, %v1308
        %v1343 = vsel %vm797, %v1157, %v1310
        %v1344 = vsel %vm797, %v1158, %v1312
        %v1345 = vsel %vm797, %v1159, %v1314
        %v1346 = vsel %vm797, %v1160, %v1316
        %v1347 = vsel %vm797, %v1161, %v1318
        %v1348 = vsel %vm797, %v1162, %v1320
        %v1349 = vsel %vm797, %v1163, %v1322
        %v1350 = vsel %vm797, %v1164, %v1324
        %v1351 = vsel %vm797, %v1165, %v1326
        %v1352 = vsel %vm797, %v1166, %v1328
        %1353 = vrot.lane.b32.xlu0 %v1155, 127
        %v1354 = vpop.permute.xlu0 %1353
        %1355 = vrot.lane.b32.xlu0 %v1156, 127
        %v1356 = vpop.permute.xlu0 %1355
        %1357 = vrot.lane.b32.xlu0 %v1157, 127
        %v1358 = vpop.permute.xlu0 %1357
        %1359 = vrot.lane.b32.xlu0 %v1158, 127
        %v1360 = vpop.permute.xlu0 %1359
        %1361 = vrot.lane.b32.xlu0 %v1159, 127
        %v1362 = vpop.permute.xlu0 %1361
        %1363 = vrot.lane.b32.xlu0 %v1160, 127
        %v1364 = vpop.permute.xlu0 %1363
        %1365 = vrot.lane.b32.xlu0 %v1161, 127
        %v1366 = vpop.permute.xlu0 %1365
        %1367 = vrot.lane.b32.xlu0 %v1162, 127
        %v1368 = vpop.permute.xlu0 %1367
        %1369 = vrot.lane.b32.xlu0 %v1163, 127
        %v1370 = vpop.permute.xlu0 %1369
        %1371 = vrot.lane.b32.xlu0 %v1164, 127
        %v1372 = vpop.permute.xlu0 %1371
        %1373 = vrot.lane.b32.xlu0 %v1165, 127
        %v1374 = vpop.permute.xlu0 %1373
        %1375 = vrot.lane.b32.xlu0 %v1166, 127
        %v1376 = vpop.permute.xlu0 %1375
        %v1389 = vsel %vm846, %v1354, %v1155
        %v1390 = vsel %vm846, %v1356, %v1156
        %v1391 = vsel %vm846, %v1358, %v1157
        %v1392 = vsel %vm846, %v1360, %v1158
        %v1393 = vsel %vm846, %v1362, %v1159
        %v1394 = vsel %vm846, %v1364, %v1160
        %v1395 = vsel %vm846, %v1366, %v1161
        %v1396 = vsel %vm846, %v1368, %v1162
        %v1397 = vsel %vm846, %v1370, %v1163
        %v1398 = vsel %vm846, %v1372, %v1164
        %v1399 = vsel %vm846, %v1374, %v1165
        %v1400 = vsel %vm846, %v1376, %v1166
        %v1401 = vsub.f32 %v1389, %v1341
        %v1402 = vsub.f32 %v1390, %v1342
        %v1403 = vsub.f32 %v1391, %v1343
        %v1404 = vsub.f32 %v1392, %v1344
        %v1405 = vsub.f32 %v1393, %v1345
        %v1406 = vsub.f32 %v1394, %v1346
        %v1407 = vsub.f32 %v1395, %v1347
        %v1408 = vsub.f32 %v1396, %v1348
        %v1409 = vsub.f32 %v1397, %v1349
        %v1410 = vsub.f32 %v1398, %v1350
        %v1411 = vsub.f32 %v1399, %v1351
        %v1412 = vsub.f32 %v1400, %v1352
        %v1413 = vmul.f32 %v1401, %v610
        %v1414 = vmul.f32 %v1402, %v610
        %v1415 = vmul.f32 %v1403, %v610
        %v1416 = vmul.f32 %v1404, %v610
        %v1417 = vmul.f32 %v1405, %v610
        %v1418 = vmul.f32 %v1406, %v610
        %v1419 = vmul.f32 %v1407, %v610
        %v1420 = vmul.f32 %v1408, %v610
        %v1421 = vmul.f32 %v1409, %v610
        %v1422 = vmul.f32 %v1410, %v610
        %v1423 = vmul.f32 %v1411, %v610
        %v1424 = vmul.f32 %v1412, %v610
        %v1425 = vadd.f32 %v749, %v914
        %v1426 = vadd.f32 %v750, %v915
        %v1427 = vadd.f32 %v751, %v916
        %v1428 = vadd.f32 %v752, %v917
        %v1429 = vadd.f32 %v753, %v918
        %v1430 = vadd.f32 %v754, %v919
        %v1431 = vadd.f32 %v755, %v920
        %v1432 = vadd.f32 %v756, %v921
        %v1433 = vadd.f32 %v757, %v922
        %v1434 = vadd.f32 %v758, %v923
        %v1435 = vadd.f32 %v759, %v924
        %v1436 = vadd.f32 %v760, %v925
        %v1437 = vmul.f32 %v1425, 0.5
        %v1438 = vmul.f32 %v1426, 0.5
        %v1439 = vmul.f32 %v1427, 0.5
        %v1440 = vmul.f32 %v1428, 0.5
        %v1441 = vmul.f32 %v1429, 0.5
        %v1442 = vmul.f32 %v1430, 0.5
        %v1443 = vmul.f32 %v1431, 0.5
        %v1444 = vmul.f32 %v1432, 0.5
        %v1445 = vmul.f32 %v1433, 0.5
        %v1446 = vmul.f32 %v1434, 0.5
        %v1447 = vmul.f32 %v1435, 0.5
        %v1448 = vmul.f32 %v1436, 0.5
        %v1449 = vadd.f32 %v871, %v1185
        %v1450 = vadd.f32 %v872, %v1186
        %v1451 = vadd.f32 %v873, %v1187
        %v1452 = vadd.f32 %v874, %v1188
        %v1453 = vadd.f32 %v875, %v1189
        %v1454 = vadd.f32 %v876, %v1190
        %v1455 = vadd.f32 %v877, %v1191
        %v1456 = vadd.f32 %v878, %v1192
        %v1457 = vadd.f32 %v879, %v1193
        %v1458 = vadd.f32 %v880, %v1194
        %v1459 = vadd.f32 %v881, %v1195
        %v1460 = vadd.f32 %v882, %v1196
        %v1461 = vmul.f32 %v1449, 0.5
        %v1462 = vmul.f32 %v1450, 0.5
        %v1463 = vmul.f32 %v1451, 0.5
        %v1464 = vmul.f32 %v1452, 0.5
        %v1465 = vmul.f32 %v1453, 0.5
        %v1466 = vmul.f32 %v1454, 0.5
        %v1467 = vmul.f32 %v1455, 0.5
        %v1468 = vmul.f32 %v1456, 0.5
        %v1469 = vmul.f32 %v1457, 0.5
        %v1470 = vmul.f32 %v1458, 0.5
        %v1471 = vmul.f32 %v1459, 0.5
        %v1472 = vmul.f32 %v1460, 0.5
        %v1473 = vadd.f32 %v1142, %v1293
        %v1474 = vadd.f32 %v1143, %v1294
        %v1475 = vadd.f32 %v1144, %v1295
        %v1476 = vadd.f32 %v1145, %v1296
        %v1477 = vadd.f32 %v1146, %v1297
        %v1478 = vadd.f32 %v1147, %v1298
        %v1479 = vadd.f32 %v1148, %v1299
        %v1480 = vadd.f32 %v1149, %v1300
        %v1481 = vadd.f32 %v1150, %v1301
        %v1482 = vadd.f32 %v1151, %v1302
        %v1483 = vadd.f32 %v1152, %v1303
        %v1484 = vadd.f32 %v1153, %v1304
        %v1485 = vmul.f32 %v1473, 0.5
        %v1486 = vmul.f32 %v1474, 0.5
        %v1487 = vmul.f32 %v1475, 0.5
        %v1488 = vmul.f32 %v1476, 0.5
        %v1489 = vmul.f32 %v1477, 0.5
        %v1490 = vmul.f32 %v1478, 0.5
        %v1491 = vmul.f32 %v1479, 0.5
        %v1492 = vmul.f32 %v1480, 0.5
        %v1493 = vmul.f32 %v1481, 0.5
        %v1494 = vmul.f32 %v1482, 0.5
        %v1495 = vmul.f32 %v1483, 0.5
        %v1496 = vmul.f32 %v1484, 0.5
        %v1497 = vadd.f32 %v639, %v1022
        %v1498 = vadd.f32 %v640, %v1023
        %v1499 = vadd.f32 %v641, %v1024
        %v1500 = vadd.f32 %v642, %v1025
        %v1501 = vadd.f32 %v643, %v1026
        %v1502 = vadd.f32 %v644, %v1027
        %v1503 = vadd.f32 %v645, %v1028
        %v1504 = vadd.f32 %v646, %v1029
        %v1505 = vadd.f32 %v647, %v1030
        %v1506 = vadd.f32 %v648, %v1031
        %v1507 = vadd.f32 %v649, %v1032
        %v1508 = vadd.f32 %v650, %v1033
        %v1509 = vadd.f32 %v1497, %v1413
        %v1510 = vadd.f32 %v1498, %v1414
        %v1511 = vadd.f32 %v1499, %v1415
        %v1512 = vadd.f32 %v1500, %v1416
        %v1513 = vadd.f32 %v1501, %v1417
        %v1514 = vadd.f32 %v1502, %v1418
        %v1515 = vadd.f32 %v1503, %v1419
        %v1516 = vadd.f32 %v1504, %v1420
        %v1517 = vadd.f32 %v1505, %v1421
        %v1518 = vadd.f32 %v1506, %v1422
        %v1519 = vadd.f32 %v1507, %v1423
        %v1520 = vadd.f32 %v1508, %v1424
        %v1521 = vmul.f32 %v1509, %v1509
        %v1522 = vmul.f32 %v1510, %v1510
        %v1523 = vmul.f32 %v1511, %v1511
        %v1524 = vmul.f32 %v1512, %v1512
        %v1525 = vmul.f32 %v1513, %v1513
        %v1526 = vmul.f32 %v1514, %v1514
        %v1527 = vmul.f32 %v1515, %v1515
        %v1528 = vmul.f32 %v1516, %v1516
        %v1529 = vmul.f32 %v1517, %v1517
        %v1530 = vmul.f32 %v1518, %v1518
        %v1531 = vmul.f32 %v1519, %v1519
        %v1532 = vmul.f32 %v1520, %v1520
        %v1533 = vmul.f32 %v639, %v639
        %v1534 = vmul.f32 %v640, %v640
        %v1535 = vmul.f32 %v641, %v641
        %v1536 = vmul.f32 %v642, %v642
        %v1537 = vmul.f32 %v643, %v643
        %v1538 = vmul.f32 %v644, %v644
        %v1539 = vmul.f32 %v645, %v645
        %v1540 = vmul.f32 %v646, %v646
        %v1541 = vmul.f32 %v647, %v647
        %v1542 = vmul.f32 %v648, %v648
        %v1543 = vmul.f32 %v649, %v649
        %v1544 = vmul.f32 %v650, %v650
        %v1545 = vmul.f32 %v1022, %v1022
        %v1546 = vmul.f32 %v1023, %v1023
        %v1547 = vmul.f32 %v1024, %v1024
        %v1548 = vmul.f32 %v1025, %v1025
        %v1549 = vmul.f32 %v1026, %v1026
        %v1550 = vmul.f32 %v1027, %v1027
        %v1551 = vmul.f32 %v1028, %v1028
        %v1552 = vmul.f32 %v1029, %v1029
        %v1553 = vmul.f32 %v1030, %v1030
        %v1554 = vmul.f32 %v1031, %v1031
        %v1555 = vmul.f32 %v1032, %v1032
        %v1556 = vmul.f32 %v1033, %v1033
        %v1557 = vadd.f32 %v1533, %v1545
        %v1558 = vadd.f32 %v1534, %v1546
        %v1559 = vadd.f32 %v1535, %v1547
        %v1560 = vadd.f32 %v1536, %v1548
        %v1561 = vadd.f32 %v1537, %v1549
        %v1562 = vadd.f32 %v1538, %v1550
        %v1563 = vadd.f32 %v1539, %v1551
        %v1564 = vadd.f32 %v1540, %v1552
        %v1565 = vadd.f32 %v1541, %v1553
        %v1566 = vadd.f32 %v1542, %v1554
        %v1567 = vadd.f32 %v1543, %v1555
        %v1568 = vadd.f32 %v1544, %v1556
        %v1569 = vmul.f32 %v1413, %v1413
        %v1570 = vmul.f32 %v1414, %v1414
        %v1571 = vmul.f32 %v1415, %v1415
        %v1572 = vmul.f32 %v1416, %v1416
        %v1573 = vmul.f32 %v1417, %v1417
        %v1574 = vmul.f32 %v1418, %v1418
        %v1575 = vmul.f32 %v1419, %v1419
        %v1576 = vmul.f32 %v1420, %v1420
        %v1577 = vmul.f32 %v1421, %v1421
        %v1578 = vmul.f32 %v1422, %v1422
        %v1579 = vmul.f32 %v1423, %v1423
        %v1580 = vmul.f32 %v1424, %v1424
        %v1581 = vadd.f32 %v1557, %v1569
        %v1582 = vadd.f32 %v1558, %v1570
        %v1583 = vadd.f32 %v1559, %v1571
        %v1584 = vadd.f32 %v1560, %v1572
        %v1585 = vadd.f32 %v1561, %v1573
        %v1586 = vadd.f32 %v1562, %v1574
        %v1587 = vadd.f32 %v1563, %v1575
        %v1588 = vadd.f32 %v1564, %v1576
        %v1589 = vadd.f32 %v1565, %v1577
        %v1590 = vadd.f32 %v1566, %v1578
        %v1591 = vadd.f32 %v1567, %v1579
        %v1592 = vadd.f32 %v1568, %v1580
        %v1593 = vmul.f32 %v1437, %v1437
        %v1594 = vmul.f32 %v1438, %v1438
        %v1595 = vmul.f32 %v1439, %v1439
        %v1596 = vmul.f32 %v1440, %v1440
        %v1597 = vmul.f32 %v1441, %v1441
        %v1598 = vmul.f32 %v1442, %v1442
        %v1599 = vmul.f32 %v1443, %v1443
        %v1600 = vmul.f32 %v1444, %v1444
        %v1601 = vmul.f32 %v1445, %v1445
        %v1602 = vmul.f32 %v1446, %v1446
        %v1603 = vmul.f32 %v1447, %v1447
        %v1604 = vmul.f32 %v1448, %v1448
        %v1605 = vmul.f32 %v1461, %v1461
        %v1606 = vmul.f32 %v1462, %v1462
        %v1607 = vmul.f32 %v1463, %v1463
        %v1608 = vmul.f32 %v1464, %v1464
        %v1609 = vmul.f32 %v1465, %v1465
        %v1610 = vmul.f32 %v1466, %v1466
        %v1611 = vmul.f32 %v1467, %v1467
        %v1612 = vmul.f32 %v1468, %v1468
        %v1613 = vmul.f32 %v1469, %v1469
        %v1614 = vmul.f32 %v1470, %v1470
        %v1615 = vmul.f32 %v1471, %v1471
        %v1616 = vmul.f32 %v1472, %v1472
        %v1617 = vadd.f32 %v1593, %v1605
        %v1618 = vadd.f32 %v1594, %v1606
        %v1619 = vadd.f32 %v1595, %v1607
        %v1620 = vadd.f32 %v1596, %v1608
        %v1621 = vadd.f32 %v1597, %v1609
        %v1622 = vadd.f32 %v1598, %v1610
        %v1623 = vadd.f32 %v1599, %v1611
        %v1624 = vadd.f32 %v1600, %v1612
        %v1625 = vadd.f32 %v1601, %v1613
        %v1626 = vadd.f32 %v1602, %v1614
        %v1627 = vadd.f32 %v1603, %v1615
        %v1628 = vadd.f32 %v1604, %v1616
        %v1629 = vmul.f32 %v1485, %v1485
        %v1630 = vmul.f32 %v1486, %v1486
        %v1631 = vmul.f32 %v1487, %v1487
        %v1632 = vmul.f32 %v1488, %v1488
        %v1633 = vmul.f32 %v1489, %v1489
        %v1634 = vmul.f32 %v1490, %v1490
        %v1635 = vmul.f32 %v1491, %v1491
        %v1636 = vmul.f32 %v1492, %v1492
        %v1637 = vmul.f32 %v1493, %v1493
        %v1638 = vmul.f32 %v1494, %v1494
        %v1639 = vmul.f32 %v1495, %v1495
        %v1640 = vmul.f32 %v1496, %v1496
        %v1641 = vadd.f32 %v1617, %v1629
        %v1642 = vadd.f32 %v1618, %v1630
        %v1643 = vadd.f32 %v1619, %v1631
        %v1644 = vadd.f32 %v1620, %v1632
        %v1645 = vadd.f32 %v1621, %v1633
        %v1646 = vadd.f32 %v1622, %v1634
        %v1647 = vadd.f32 %v1623, %v1635
        %v1648 = vadd.f32 %v1624, %v1636
        %v1649 = vadd.f32 %v1625, %v1637
        %v1650 = vadd.f32 %v1626, %v1638
        %v1651 = vadd.f32 %v1627, %v1639
        %v1652 = vadd.f32 %v1628, %v1640
        %v1653 = vmul.f32 %v1641, 2.0
        %v1654 = vmul.f32 %v1642, 2.0
        %v1655 = vmul.f32 %v1643, 2.0
        %v1656 = vmul.f32 %v1644, 2.0
        %v1657 = vmul.f32 %v1645, 2.0
        %v1658 = vmul.f32 %v1646, 2.0
        %v1659 = vmul.f32 %v1647, 2.0
        %v1660 = vmul.f32 %v1648, 2.0
        %v1661 = vmul.f32 %v1649, 2.0
        %v1662 = vmul.f32 %v1650, 2.0
        %v1663 = vmul.f32 %v1651, 2.0
        %v1664 = vmul.f32 %v1652, 2.0
        %v1665 = vadd.f32 %v1581, %v1653
        %v1666 = vadd.f32 %v1582, %v1654
        %v1667 = vadd.f32 %v1583, %v1655
        %v1668 = vadd.f32 %v1584, %v1656
        %v1669 = vadd.f32 %v1585, %v1657
        %v1670 = vadd.f32 %v1586, %v1658
        %v1671 = vadd.f32 %v1587, %v1659
        %v1672 = vadd.f32 %v1588, %v1660
        %v1673 = vadd.f32 %v1589, %v1661
        %v1674 = vadd.f32 %v1590, %v1662
        %v1675 = vadd.f32 %v1591, %v1663
        %v1676 = vadd.f32 %v1592, %v1664
        %v1677 = vmul.f32 %v1665, 1.5
        %v1678 = vmul.f32 %v1666, 1.5
        %v1679 = vmul.f32 %v1667, 1.5
        %v1680 = vmul.f32 %v1668, 1.5
        %v1681 = vmul.f32 %v1669, 1.5
        %v1682 = vmul.f32 %v1670, 1.5
        %v1683 = vmul.f32 %v1671, 1.5
        %v1684 = vmul.f32 %v1672, 1.5
        %v1685 = vmul.f32 %v1673, 1.5
        %v1686 = vmul.f32 %v1674, 1.5
        %v1687 = vmul.f32 %v1675, 1.5
        %v1688 = vmul.f32 %v1676, 1.5
        %v1689 = vadd.f32 %v1521, %v1677
        %v1690 = vadd.f32 %v1522, %v1678
        %v1691 = vadd.f32 %v1523, %v1679
        %v1692 = vadd.f32 %v1524, %v1680
        %v1693 = vadd.f32 %v1525, %v1681
        %v1694 = vadd.f32 %v1526, %v1682
        %v1695 = vadd.f32 %v1527, %v1683
        %v1696 = vadd.f32 %v1528, %v1684
        %v1697 = vadd.f32 %v1529, %v1685
        %v1698 = vadd.f32 %v1530, %v1686
        %v1699 = vadd.f32 %v1531, %v1687
        %v1700 = vadd.f32 %v1532, %v1688
        %vm1701 = vcmask 130048
        %v1702 = vsel %vm1701, %v1689, 0.0
        %v1703 = vsel %vm1701, %v1691, 0.0
        %v1704 = vadd.f32 %v1702, %v1703
        %v1705 = vsel %vm1701, %v1693, 0.0
        %v1706 = vadd.f32 %v1704, %v1705
        %v1707 = vsel %vm1701, %v1695, 0.0
        %v1708 = vadd.f32 %v1706, %v1707
        %v1709 = vsel %vm1701, %v1697, 0.0
        %v1710 = vadd.f32 %v1708, %v1709
        %v1711 = vsel %vm1701, %v1699, 0.0
        %v1712 = vadd.f32 %v1710, %v1711
        %vm1713 = vcmask 123904
        %v1714 = vsel %vm1713, %v1690, 0.0
        %v1715 = vsel %vm1713, %v1692, 0.0
        %v1716 = vadd.f32 %v1714, %v1715
        %v1717 = vsel %vm1713, %v1694, 0.0
        %v1718 = vadd.f32 %v1716, %v1717
        %v1719 = vsel %vm1713, %v1696, 0.0
        %v1720 = vadd.f32 %v1718, %v1719
        %v1721 = vsel %vm1713, %v1698, 0.0
        %v1722 = vadd.f32 %v1720, %v1721
        %v1723 = vsel %vm1713, %v1700, 0.0
        %v1724 = vadd.f32 %v1722, %v1723
        %v1725 = vsel %vm1701, %v1712, 0.0
        %v1726 = vsel %vm1713, %v1724, 0.0
        %v1727 = vadd.f32 %v1725, %v1726
        %v1728 = vrot.slane %v1727, 4
        %v1729 = vadd.f32 %v1727, %v1728
        %v1730 = vrot.slane %v1729, 2
        %v1731 = vadd.f32 %v1729, %v1730
        %v1732 = vrot.slane %v1731, 1
        %v1733 = vadd.f32 %v1731, %v1732
        %v1734 = vsel %vm1701, %v1733, 0.0
        %1735 = vadd.xlane.f32.xlu0 %v1734
        %v1736 = vpop.xlane.xlu0 %1735
        %vm1737 = vcmask 0
        %1738 = vst.msk [vmem:[%s562] sm:$0x1] %vm1737, %v1736
        %p1739 = scmp.lt.s32.totalorder %s18, 1
        %s1740 = scalar_select %p1739, %s18, 1
        %p1741 = scmp.lt.s32.totalorder %s19, 1
        %s1742 = scalar_select %p1741, %s19, 1
        %s1743 = smul.addr %s1740, 2
        %s1744 = sadd.s32 %s1742, %s1743
        %s1745 = scalar_lea.vmem %s3, %s1744
        // Predicated region
        $region147: #{_lambda_.1} parent=133 // pred_check
          %p1746 = pneg %p146
        $region148: #{_lambda_.1} parent=133 // pred_check_branch
          %1748 = sbr.rel (%p1746) target = $region150
        $region149: #{_lambda_.1} parent=133 // pred_region
          _
        $region150: #{_lambda_.1} parent=133 // pred_fallthru
          _
      $region134: #{_lambda_.1} parent=5 // pred_fallthru
        _
      %p1749 = scmp.le.s32.totalorder 2, %s9
      // Predicated region
      $region151: #{_lambda_.1} parent=5 // pred_check
        %p1750 = pneg %p1749
      $region152: #{_lambda_.1} parent=5 // pred_check_branch
        %1752 = sbr.rel (%p1750) target = $region154
      $region153: #{_lambda_.1} parent=5 // pred_region
        %s1753 = ssub.s32 %s9, 2
        // Predicated region
        $region155: #{_lambda_.1} parent=153 // pred_check
          %p1754 = pneg %p152
        $region156: #{_lambda_.1} parent=153 // pred_check_branch
          %1756 = sbr.rel (%p1754) target = $region158
        $region157: #{_lambda_.1} parent=153 // pred_region
          %p1757 = scmp.lt.s32.totalorder %s20, 1
          %s1758 = scalar_select %p1757, %s20, 1
          %p1759 = scmp.lt.s32.totalorder %s21, 1
          %s1760 = scalar_select %p1759, %s21, 1
          %s1761 = smul.addr %s1758, 2
          %s1762 = sadd.s32 %s1760, %s1761
          %s1763 = scalar_lea.vmem %s3, %s1762
        $region158: #{_lambda_.1} parent=153 // pred_fallthru
          _
      $region154: #{_lambda_.1} parent=5 // pred_fallthru
        _
    $region6: #{_lambda_.1} parent=1 // loop_footer
      %s13 = sadd.s32 1, %s9
    $region7: #{_lambda_.1} parent=1 // loop_footer_branch
      %8 = sbr.rel target = $region3
    $region8: #{_lambda_.1} parent=1 // loop_exit
      _

</llo_original>
